<compile_context>
chip_gen: v7x
topology: tpu7x:2x2x1
jax: 0.10.0
libtpu: 0.0.40
codegen_flags: <defaults>
</compile_context>

<pallas_src>
import jax
import jax.numpy as jnp
from jax.experimental import pallas as pl
from jax.experimental.pallas import tpu as pltpu


def ae_kernel(x_ref,
              w1_ref, b1_ref,
              w2_ref, b2_ref,
              w3_ref, b3_ref,
              w4_ref, b4_ref,
              w5_ref, b5_ref,
              xbar_ref, enc2_ref):
    """Fused 5-layer MLP autoencoder forward for one batch tile."""
    cdt = w1_ref.dtype                      # compute dtype (bf16 by default)
    x = x_ref[...].astype(cdt)

    # enc_h1 = relu(x @ W1 + b1)   (accumulate in f32, epilogue in f32)
    h1 = jnp.dot(x, w1_ref[...], preferred_element_type=jnp.float32) + b1_ref[...]
    h1 = jnp.maximum(h1, 0.0)

    # enc_h2 = relu(h1 @ W2 + b2)  -> second output
    h2 = jnp.dot(h1.astype(cdt), w2_ref[...],
                 preferred_element_type=jnp.float32) + b2_ref[...]
    h2 = jnp.maximum(h2, 0.0)
    enc2_ref[...] = h2.astype(enc2_ref.dtype)

    # dec_h1 = relu(h2 @ W3 + b3)
    d1 = jnp.dot(h2.astype(cdt), w3_ref[...],
                 preferred_element_type=jnp.float32) + b3_ref[...]
    d1 = jnp.maximum(d1, 0.0)

    # dec_h2 = relu(d1 @ W4 + b4)
    d2 = jnp.dot(d1.astype(cdt), w4_ref[...],
                 preferred_element_type=jnp.float32) + b4_ref[...]
    d2 = jnp.maximum(d2, 0.0)

    # x_bar = d2 @ W5 + b5   (no activation) -> first output
    xb = jnp.dot(d2.astype(cdt), w5_ref[...],
                 preferred_element_type=jnp.float32) + b5_ref[...]
    xbar_ref[...] = xb.astype(xbar_ref.dtype)


def _pick_batch_tile(batch):
    """Largest divisor of `batch` that is <= 256 (MXU-filling, VMEM-safe)."""
    target = min(batch, 256)
    for tile in range(target, 0, -1):
        if batch % tile == 0:
            return tile
    return batch


def ae_forward(x, params, *, batch_tile=None, compute_dtype=jnp.bfloat16):
    """Run the AE forward pass.

    params: dict with w1..w5 stored pre-transposed as (in, out) and b1..b5 as
    (1, out). Returns (x_bar, enc_h2) in x.dtype.
    """
    B, n_input = x.shape
    dims = [(params[f"w{k}"].shape[0], params[f"w{k}"].shape[1]) for k in range(1, 6)]
    n_enc_2 = dims[1][1]
    assert dims[-1][1] == n_input, "x_bar layer must map back to n_input"

    if batch_tile is None:
        batch_tile = _pick_batch_tile(B)
    assert B % batch_tile == 0, "batch must be divisible by batch_tile"

    # Host-side dtype policy: bf16 matmul operands, f32 biases for the epilogue.
    weight_args = []
    for k in range(1, 6):
        weight_args.append(params[f"w{k}"].astype(compute_dtype))
        weight_args.append(params[f"b{k}"].astype(jnp.float32))

    # Advisory cost estimate so XLA overlaps this call with surrounding ops.
    flops = 2 * B * sum(fi * fo for fi, fo in dims)
    bytes_accessed = (
        x.size * x.dtype.itemsize
        + sum(int(a.size) * a.dtype.itemsize for a in weight_args)
        + B * (n_input + n_enc_2) * x.dtype.itemsize)
    cost = pl.CostEstimate(flops=flops, transcendentals=0,
                           bytes_accessed=bytes_accessed)

    # VMEM budget (matters for scaled-up configs on v7x 64 MiB / v5e default 16 MiB).
    c_item = jnp.dtype(compute_dtype).itemsize
    vmem_est = (sum(fi * fo for fi, fo in dims) * c_item            # weights (1 buffer)
                + sum(fo for _, fo in dims) * 4                     # biases
                + 2 * batch_tile * n_input * 4                      # double-buffered x tile
                + 2 * batch_tile * (n_input + n_enc_2) * 4          # double-buffered outputs
                + 2 * batch_tile * max(fo for _, fo in dims) * 4)   # live activations
    compiler_kwargs = {}
    if vmem_est > 12 * 1024 * 1024:
        compiler_kwargs["vmem_limit_bytes"] = min(int(2 * vmem_est), 60 * 1024 * 1024)

    out_shape = (
        jax.ShapeDtypeStruct((B, n_input), x.dtype),   # x_bar
        jax.ShapeDtypeStruct((B, n_enc_2), x.dtype),   # enc_h2
    )

    def build(weight_mode):
        def invariant_spec(arr):
            kwargs = {}
            if weight_mode is not None:
                kwargs["pipeline_mode"] = weight_mode
            # Whole-array block, same block index for every grid step.
            return pl.BlockSpec(arr.shape, lambda i: (0, 0), **kwargs)

        in_specs = [pl.BlockSpec((batch_tile, n_input), lambda i: (i, 0))]
        for arr in weight_args:
            in_specs.append(invariant_spec(arr))

        out_specs = (
            pl.BlockSpec((batch_tile, n_input), lambda i: (i, 0)),   # x_bar (lane-dense)
            pl.BlockSpec((batch_tile, n_enc_2), lambda i: (i, 0)),   # enc_h2 (lane-dense)
        )

        return pl.pallas_call(
            ae_kernel,
            grid=(B // batch_tile,),
            in_specs=in_specs,
            out_specs=out_specs,
            out_shape=out_shape,
            compiler_params=pltpu.CompilerParams(
                dimension_semantics=("parallel",), **compiler_kwargs),
            cost_estimate=cost,
        )

    args = (x, *weight_args)
    try:
        # Single-buffer the grid-invariant weights/biases (no pipelining benefit).
        return build(pl.Buffered(1))(*args)
    except Exception:
        # Fallback: default (double-buffered) specs if pipeline_mode=Buffered(1)
        # is not supported by this jax version. Correctness is identical.
        return build(None)(*args)


def init_params(key, n_enc_1, n_enc_2, n_dec_1, n_dec_2, n_input):
    """Deterministic PyTorch-Linear-style init: U(-1/sqrt(fan_in), 1/sqrt(fan_in)).
    Weights are stored pre-transposed as (in, out); biases as (1, out)."""
    dims = [
        (n_input, n_enc_1),   # enc_1
        (n_enc_1, n_enc_2),   # enc_2
        (n_enc_2, n_dec_1),   # dec_1
        (n_dec_1, n_dec_2),   # dec_2
        (n_dec_2, n_input),   # x_bar_layer
    ]
    params = {}
    for idx, (fan_in, fan_out) in enumerate(dims, start=1):
        key, kw, kb = jax.random.split(key, 3)
        bound = 1.0 / jnp.sqrt(jnp.float32(fan_in))
        params[f"w{idx}"] = jax.random.uniform(
            kw, (fan_in, fan_out), jnp.float32, -bound, bound)
        params[f"b{idx}"] = jax.random.uniform(
            kb, (1, fan_out), jnp.float32, -bound, bound)
    return params


def ae_reference(x, params, compute_dtype=jnp.float32):
    """Plain-JAX reference matching the PyTorch forward and the kernel's
    dtype policy (matmul operands in `compute_dtype`, f32 accumulation)."""
    def lin(h, w, b):
        return jnp.dot(h.astype(compute_dtype), w.astype(compute_dtype),
                       preferred_element_type=jnp.float32) + b
    h1 = jax.nn.relu(lin(x, params["w1"], params["b1"]))
    h2 = jax.nn.relu(lin(h1, params["w2"], params["b2"]))
    d1 = jax.nn.relu(lin(h2, params["w3"], params["b3"]))
    d2 = jax.nn.relu(lin(d1, params["w4"], params["b4"]))
    x_bar = lin(d2, params["w5"], params["b5"])
    return x_bar, h2


if __name__ == "__main__":
    # Small, TPU-tile-friendly sizes consistent with the module's Linear stack.
    n_input, n_enc_1, n_enc_2, n_dec_1, n_dec_2 = 256, 128, 128, 128, 128
    batch = 16

    key = jax.random.PRNGKey(0)
    key, kx = jax.random.split(key)
    x = jax.random.normal(kx, (batch, n_input), jnp.float32)
    params = init_params(key, n_enc_1, n_enc_2, n_dec_1, n_dec_2, n_input)

    # Whole batch fits one grid step at this size (batch_tile auto = 16).
    x_bar, enc_h2 = ae_forward(x, params, compute_dtype=jnp.bfloat16)
    jax.block_until_ready((x_bar, enc_h2))

    x_bar_ref, enc_h2_ref = ae_reference(x, params, compute_dtype=jnp.bfloat16)
    assert x_bar.shape == (batch, n_input)
    assert enc_h2.shape == (batch, n_enc_2)
    assert jnp.allclose(x_bar, x_bar_ref, atol=2e-2, rtol=2e-2)
    assert jnp.allclose(enc_h2, enc_h2_ref, atol=2e-2, rtol=2e-2)

    print("KERNEL_OK")
</pallas_src>

<mosaic_0001>
module attributes {stable_mosaic.version = 11 : i64} {
  func.func @ae_kernel(%arg0: i32, %arg1: memref<16x256xf32, #tpu.memory_space<vmem>>, %arg2: memref<256x128xbf16, #tpu.memory_space<vmem>>, %arg3: memref<1x128xf32, #tpu.memory_space<vmem>>, %arg4: memref<128x128xbf16, #tpu.memory_space<vmem>>, %arg5: memref<1x128xf32, #tpu.memory_space<vmem>>, %arg6: memref<128x128xbf16, #tpu.memory_space<vmem>>, %arg7: memref<1x128xf32, #tpu.memory_space<vmem>>, %arg8: memref<128x128xbf16, #tpu.memory_space<vmem>>, %arg9: memref<1x128xf32, #tpu.memory_space<vmem>>, %arg10: memref<128x256xbf16, #tpu.memory_space<vmem>>, %arg11: memref<1x256xf32, #tpu.memory_space<vmem>>, %arg12: memref<16x256xf32, #tpu.memory_space<vmem>>, %arg13: memref<16x128xf32, #tpu.memory_space<vmem>>) attributes {dimension_semantics = [#tpu.dimension_semantics<parallel>], iteration_bounds = array<i64: 1>, scalar_prefetch = 0 : i64, scratch_operands = 0 : i64, tpu.core_type = #tpu.core_type<tc>, window_params = [{transform_indices = @transform_0, window_bounds = array<i64: 16, 256>}, {pipeline_mode = #tpu.pipeline_mode<synchronous>, transform_indices = @transform_1, window_bounds = array<i64: 256, 128>}, {pipeline_mode = #tpu.pipeline_mode<synchronous>, transform_indices = @transform_2, window_bounds = array<i64: 1, 128>}, {pipeline_mode = #tpu.pipeline_mode<synchronous>, transform_indices = @transform_3, window_bounds = array<i64: 128, 128>}, {pipeline_mode = #tpu.pipeline_mode<synchronous>, transform_indices = @transform_4, window_bounds = array<i64: 1, 128>}, {pipeline_mode = #tpu.pipeline_mode<synchronous>, transform_indices = @transform_5, window_bounds = array<i64: 128, 128>}, {pipeline_mode = #tpu.pipeline_mode<synchronous>, transform_indices = @transform_6, window_bounds = array<i64: 1, 128>}, {pipeline_mode = #tpu.pipeline_mode<synchronous>, transform_indices = @transform_7, window_bounds = array<i64: 128, 128>}, {pipeline_mode = #tpu.pipeline_mode<synchronous>, transform_indices = @transform_8, window_bounds = array<i64: 1, 128>}, {pipeline_mode = #tpu.pipeline_mode<synchronous>, transform_indices = @transform_9, window_bounds = array<i64: 128, 256>}, {pipeline_mode = #tpu.pipeline_mode<synchronous>, transform_indices = @transform_10, window_bounds = array<i64: 1, 256>}, {transform_indices = @transform_11, window_bounds = array<i64: 16, 256>}, {transform_indices = @transform_12, window_bounds = array<i64: 16, 128>}]} {
    %c0 = arith.constant 0 : index
    %c0_0 = arith.constant 0 : index
    %0 = vector.load %arg1[%c0, %c0_0] : memref<16x256xf32, #tpu.memory_space<vmem>>, vector<16x256xf32>
    %1 = arith.truncf %0 : vector<16x256xf32> to vector<16x256xbf16>
    %c0_1 = arith.constant 0 : index
    %c0_2 = arith.constant 0 : index
    %2 = vector.load %arg2[%c0_1, %c0_2] : memref<256x128xbf16, #tpu.memory_space<vmem>>, vector<256x128xbf16>
    %cst = arith.constant dense<0.000000e+00> : vector<16x128xf32>
    %3 = tpu.matmul %1, %2, %cst {dimension_numbers = #tpu.dot_dimension_numbers<[1], [0], [0], [1], [0, 0, 1, 1], [], []>} : vector<16x256xbf16>, vector<256x128xbf16>, vector<16x128xf32> -> vector<16x128xf32>
    %c0_3 = arith.constant 0 : index
    %c0_4 = arith.constant 0 : index
    %4 = vector.load %arg3[%c0_3, %c0_4] : memref<1x128xf32, #tpu.memory_space<vmem>>, vector<1x128xf32>
    %5 = vector.broadcast %4 : vector<1x128xf32> to vector<16x128xf32>
    %6 = arith.addf %3, %5 : vector<16x128xf32>
    %cst_5 = arith.constant 0.000000e+00 : f32
    %7 = vector.broadcast %cst_5 : f32 to vector<16x128xf32>
    %8 = arith.maximumf %6, %7 : vector<16x128xf32>
    %9 = arith.truncf %8 : vector<16x128xf32> to vector<16x128xbf16>
    %c0_6 = arith.constant 0 : index
    %c0_7 = arith.constant 0 : index
    %10 = vector.load %arg4[%c0_6, %c0_7] : memref<128x128xbf16, #tpu.memory_space<vmem>>, vector<128x128xbf16>
    %cst_8 = arith.constant dense<0.000000e+00> : vector<16x128xf32>
    %11 = tpu.matmul %9, %10, %cst_8 {dimension_numbers = #tpu.dot_dimension_numbers<[1], [0], [0], [1], [0, 0, 1, 1], [], []>} : vector<16x128xbf16>, vector<128x128xbf16>, vector<16x128xf32> -> vector<16x128xf32>
    %c0_9 = arith.constant 0 : index
    %c0_10 = arith.constant 0 : index
    %12 = vector.load %arg5[%c0_9, %c0_10] : memref<1x128xf32, #tpu.memory_space<vmem>>, vector<1x128xf32>
    %13 = vector.broadcast %12 : vector<1x128xf32> to vector<16x128xf32>
    %14 = arith.addf %11, %13 : vector<16x128xf32>
    %cst_11 = arith.constant 0.000000e+00 : f32
    %15 = vector.broadcast %cst_11 : f32 to vector<16x128xf32>
    %16 = arith.maximumf %14, %15 : vector<16x128xf32>
    %c0_12 = arith.constant 0 : index
    %c0_13 = arith.constant 0 : index
    %17 = vector.load %arg13[%c0_12, %c0_13] : memref<16x128xf32, #tpu.memory_space<vmem>>, vector<16x128xf32>
    tpu.vector_store %arg13[%c0_12, %c0_13], %16 {strides = array<i32>} : memref<16x128xf32, #tpu.memory_space<vmem>>, vector<16x128xf32>,
    %18 = arith.truncf %16 : vector<16x128xf32> to vector<16x128xbf16>
    %c0_14 = arith.constant 0 : index
    %c0_15 = arith.constant 0 : index
    %19 = vector.load %arg6[%c0_14, %c0_15] : memref<128x128xbf16, #tpu.memory_space<vmem>>, vector<128x128xbf16>
    %cst_16 = arith.constant dense<0.000000e+00> : vector<16x128xf32>
    %20 = tpu.matmul %18, %19, %cst_16 {dimension_numbers = #tpu.dot_dimension_numbers<[1], [0], [0], [1], [0, 0, 1, 1], [], []>} : vector<16x128xbf16>, vector<128x128xbf16>, vector<16x128xf32> -> vector<16x128xf32>
    %c0_17 = arith.constant 0 : index
    %c0_18 = arith.constant 0 : index
    %21 = vector.load %arg7[%c0_17, %c0_18] : memref<1x128xf32, #tpu.memory_space<vmem>>, vector<1x128xf32>
    %22 = vector.broadcast %21 : vector<1x128xf32> to vector<16x128xf32>
    %23 = arith.addf %20, %22 : vector<16x128xf32>
    %cst_19 = arith.constant 0.000000e+00 : f32
    %24 = vector.broadcast %cst_19 : f32 to vector<16x128xf32>
    %25 = arith.maximumf %23, %24 : vector<16x128xf32>
    %26 = arith.truncf %25 : vector<16x128xf32> to vector<16x128xbf16>
    %c0_20 = arith.constant 0 : index
    %c0_21 = arith.constant 0 : index
    %27 = vector.load %arg8[%c0_20, %c0_21] : memref<128x128xbf16, #tpu.memory_space<vmem>>, vector<128x128xbf16>
    %cst_22 = arith.constant dense<0.000000e+00> : vector<16x128xf32>
    %28 = tpu.matmul %26, %27, %cst_22 {dimension_numbers = #tpu.dot_dimension_numbers<[1], [0], [0], [1], [0, 0, 1, 1], [], []>} : vector<16x128xbf16>, vector<128x128xbf16>, vector<16x128xf32> -> vector<16x128xf32>
    %c0_23 = arith.constant 0 : index
    %c0_24 = arith.constant 0 : index
    %29 = vector.load %arg9[%c0_23, %c0_24] : memref<1x128xf32, #tpu.memory_space<vmem>>, vector<1x128xf32>
    %30 = vector.broadcast %29 : vector<1x128xf32> to vector<16x128xf32>
    %31 = arith.addf %28, %30 : vector<16x128xf32>
    %cst_25 = arith.constant 0.000000e+00 : f32
    %32 = vector.broadcast %cst_25 : f32 to vector<16x128xf32>
    %33 = arith.maximumf %31, %32 : vector<16x128xf32>
    %34 = arith.truncf %33 : vector<16x128xf32> to vector<16x128xbf16>
    %c0_26 = arith.constant 0 : index
    %c0_27 = arith.constant 0 : index
    %35 = vector.load %arg10[%c0_26, %c0_27] : memref<128x256xbf16, #tpu.memory_space<vmem>>, vector<128x256xbf16>
    %cst_28 = arith.constant dense<0.000000e+00> : vector<16x256xf32>
    %36 = tpu.matmul %34, %35, %cst_28 {dimension_numbers = #tpu.dot_dimension_numbers<[1], [0], [0], [1], [0, 0, 1, 1], [], []>} : vector<16x128xbf16>, vector<128x256xbf16>, vector<16x256xf32> -> vector<16x256xf32>
    %c0_29 = arith.constant 0 : index
    %c0_30 = arith.constant 0 : index
    %37 = vector.load %arg11[%c0_29, %c0_30] : memref<1x256xf32, #tpu.memory_space<vmem>>, vector<1x256xf32>
    %38 = vector.broadcast %37 : vector<1x256xf32> to vector<16x256xf32>
    %39 = arith.addf %36, %38 : vector<16x256xf32>
    %c0_31 = arith.constant 0 : index
    %c0_32 = arith.constant 0 : index
    %40 = vector.load %arg12[%c0_31, %c0_32] : memref<16x256xf32, #tpu.memory_space<vmem>>, vector<16x256xf32>
    tpu.vector_store %arg12[%c0_31, %c0_32], %39 {strides = array<i32>} : memref<16x256xf32, #tpu.memory_space<vmem>>, vector<16x256xf32>,
    return
  }
  func.func @transform_0(%arg0: i32) -> (i32, i32) {
    %c0_i32 = arith.constant 0 : i32
    %c0_i32_0 = arith.constant 0 : i32
    return %arg0, %c0_i32 : i32, i32
  }
  func.func @transform_1(%arg0: i32) -> (i32, i32) {
    %c0_i32 = arith.constant 0 : i32
    %c0_i32_0 = arith.constant 0 : i32
    %c0_i32_1 = arith.constant 0 : i32
    return %c0_i32, %c0_i32_0 : i32, i32
  }
  func.func @transform_2(%arg0: i32) -> (i32, i32) {
    %c0_i32 = arith.constant 0 : i32
    %c0_i32_0 = arith.constant 0 : i32
    %c0_i32_1 = arith.constant 0 : i32
    return %c0_i32, %c0_i32_0 : i32, i32
  }
  func.func @transform_3(%arg0: i32) -> (i32, i32) {
    %c0_i32 = arith.constant 0 : i32
    %c0_i32_0 = arith.constant 0 : i32
    %c0_i32_1 = arith.constant 0 : i32
    return %c0_i32, %c0_i32_0 : i32, i32
  }
  func.func @transform_4(%arg0: i32) -> (i32, i32) {
    %c0_i32 = arith.constant 0 : i32
    %c0_i32_0 = arith.constant 0 : i32
    %c0_i32_1 = arith.constant 0 : i32
    return %c0_i32, %c0_i32_0 : i32, i32
  }
  func.func @transform_5(%arg0: i32) -> (i32, i32) {
    %c0_i32 = arith.constant 0 : i32
    %c0_i32_0 = arith.constant 0 : i32
    %c0_i32_1 = arith.constant 0 : i32
    return %c0_i32, %c0_i32_0 : i32, i32
  }
  func.func @transform_6(%arg0: i32) -> (i32, i32) {
    %c0_i32 = arith.constant 0 : i32
    %c0_i32_0 = arith.constant 0 : i32
    %c0_i32_1 = arith.constant 0 : i32
    return %c0_i32, %c0_i32_0 : i32, i32
  }
  func.func @transform_7(%arg0: i32) -> (i32, i32) {
    %c0_i32 = arith.constant 0 : i32
    %c0_i32_0 = arith.constant 0 : i32
    %c0_i32_1 = arith.constant 0 : i32
    return %c0_i32, %c0_i32_0 : i32, i32
  }
  func.func @transform_8(%arg0: i32) -> (i32, i32) {
    %c0_i32 = arith.constant 0 : i32
    %c0_i32_0 = arith.constant 0 : i32
    %c0_i32_1 = arith.constant 0 : i32
    return %c0_i32, %c0_i32_0 : i32, i32
  }
  func.func @transform_9(%arg0: i32) -> (i32, i32) {
    %c0_i32 = arith.constant 0 : i32
    %c0_i32_0 = arith.constant 0 : i32
    %c0_i32_1 = arith.constant 0 : i32
    return %c0_i32, %c0_i32_0 : i32, i32
  }
  func.func @transform_10(%arg0: i32) -> (i32, i32) {
    %c0_i32 = arith.constant 0 : i32
    %c0_i32_0 = arith.constant 0 : i32
    %c0_i32_1 = arith.constant 0 : i32
    return %c0_i32, %c0_i32_0 : i32, i32
  }
  func.func @transform_11(%arg0: i32) -> (i32, i32) {
    %c0_i32 = arith.constant 0 : i32
    %c0_i32_0 = arith.constant 0 : i32
    return %arg0, %c0_i32 : i32, i32
  }
  func.func @transform_12(%arg0: i32) -> (i32, i32) {
    %c0_i32 = arith.constant 0 : i32
    %c0_i32_0 = arith.constant 0 : i32
    return %arg0, %c0_i32 : i32, i32
  }
}

module attributes {stable_mosaic.version = 11 : i64} {
  func.func @ae_kernel(%arg0: i32, %arg1: memref<16x256xf32, #tpu.memory_space<vmem>>, %arg2: memref<256x128xbf16, #tpu.memory_space<vmem>>, %arg3: memref<1x128xf32, #tpu.memory_space<vmem>>, %arg4: memref<128x128xbf16, #tpu.memory_space<vmem>>, %arg5: memref<1x128xf32, #tpu.memory_space<vmem>>, %arg6: memref<128x128xbf16, #tpu.memory_space<vmem>>, %arg7: memref<1x128xf32, #tpu.memory_space<vmem>>, %arg8: memref<128x128xbf16, #tpu.memory_space<vmem>>, %arg9: memref<1x128xf32, #tpu.memory_space<vmem>>, %arg10: memref<128x256xbf16, #tpu.memory_space<vmem>>, %arg11: memref<1x256xf32, #tpu.memory_space<vmem>>, %arg12: memref<16x256xf32, #tpu.memory_space<vmem>>, %arg13: memref<16x128xf32, #tpu.memory_space<vmem>>) attributes {dimension_semantics = [#tpu.dimension_semantics<parallel>], iteration_bounds = array<i64: 1>, scalar_prefetch = 0 : i64, scratch_operands = 0 : i64, tpu.core_type = #tpu.core_type<tc>, window_params = [{transform_indices = @transform_0, window_bounds = array<i64: 16, 256>}, {pipeline_mode = #tpu.pipeline_mode<synchronous>, transform_indices = @transform_1, window_bounds = array<i64: 256, 128>}, {pipeline_mode = #tpu.pipeline_mode<synchronous>, transform_indices = @transform_2, window_bounds = array<i64: 1, 128>}, {pipeline_mode = #tpu.pipeline_mode<synchronous>, transform_indices = @transform_3, window_bounds = array<i64: 128, 128>}, {pipeline_mode = #tpu.pipeline_mode<synchronous>, transform_indices = @transform_4, window_bounds = array<i64: 1, 128>}, {pipeline_mode = #tpu.pipeline_mode<synchronous>, transform_indices = @transform_5, window_bounds = array<i64: 128, 128>}, {pipeline_mode = #tpu.pipeline_mode<synchronous>, transform_indices = @transform_6, window_bounds = array<i64: 1, 128>}, {pipeline_mode = #tpu.pipeline_mode<synchronous>, transform_indices = @transform_7, window_bounds = array<i64: 128, 128>}, {pipeline_mode = #tpu.pipeline_mode<synchronous>, transform_indices = @transform_8, window_bounds = array<i64: 1, 128>}, {pipeline_mode = #tpu.pipeline_mode<synchronous>, transform_indices = @transform_9, window_bounds = array<i64: 128, 256>}, {pipeline_mode = #tpu.pipeline_mode<synchronous>, transform_indices = @transform_10, window_bounds = array<i64: 1, 256>}, {transform_indices = @transform_11, window_bounds = array<i64: 16, 256>}, {transform_indices = @transform_12, window_bounds = array<i64: 16, 128>}]} {
    %c0 = arith.constant 0 : index
    %c0_0 = arith.constant 0 : index
    %0 = vector.load %arg1[%c0, %c0_0] : memref<16x256xf32, #tpu.memory_space<vmem>>, vector<16x256xf32>
    %1 = arith.truncf %0 : vector<16x256xf32> to vector<16x256xbf16>
    %c0_1 = arith.constant 0 : index
    %c0_2 = arith.constant 0 : index
    %2 = vector.load %arg2[%c0_1, %c0_2] : memref<256x128xbf16, #tpu.memory_space<vmem>>, vector<256x128xbf16>
    %cst = arith.constant dense<0.000000e+00> : vector<16x128xf32>
    %3 = tpu.matmul %1, %2, %cst {dimension_numbers = #tpu.dot_dimension_numbers<[1], [0], [0], [1], [0, 0, 1, 1], [], []>} : vector<16x256xbf16>, vector<256x128xbf16>, vector<16x128xf32> -> vector<16x128xf32>
    %c0_3 = arith.constant 0 : index
    %c0_4 = arith.constant 0 : index
    %4 = vector.load %arg3[%c0_3, %c0_4] : memref<1x128xf32, #tpu.memory_space<vmem>>, vector<1x128xf32>
    %5 = vector.broadcast %4 : vector<1x128xf32> to vector<16x128xf32>
    %6 = arith.addf %3, %5 : vector<16x128xf32>
    %cst_5 = arith.constant 0.000000e+00 : f32
    %7 = vector.broadcast %cst_5 : f32 to vector<16x128xf32>
    %8 = arith.maximumf %6, %7 : vector<16x128xf32>
    %9 = arith.truncf %8 : vector<16x128xf32> to vector<16x128xbf16>
    %c0_6 = arith.constant 0 : index
    %c0_7 = arith.constant 0 : index
    %10 = vector.load %arg4[%c0_6, %c0_7] : memref<128x128xbf16, #tpu.memory_space<vmem>>, vector<128x128xbf16>
    %cst_8 = arith.constant dense<0.000000e+00> : vector<16x128xf32>
    %11 = tpu.matmul %9, %10, %cst_8 {dimension_numbers = #tpu.dot_dimension_numbers<[1], [0], [0], [1], [0, 0, 1, 1], [], []>} : vector<16x128xbf16>, vector<128x128xbf16>, vector<16x128xf32> -> vector<16x128xf32>
    %c0_9 = arith.constant 0 : index
    %c0_10 = arith.constant 0 : index
    %12 = vector.load %arg5[%c0_9, %c0_10] : memref<1x128xf32, #tpu.memory_space<vmem>>, vector<1x128xf32>
    %13 = vector.broadcast %12 : vector<1x128xf32> to vector<16x128xf32>
    %14 = arith.addf %11, %13 : vector<16x128xf32>
    %cst_11 = arith.constant 0.000000e+00 : f32
    %15 = vector.broadcast %cst_11 : f32 to vector<16x128xf32>
    %16 = arith.maximumf %14, %15 : vector<16x128xf32>
    %c0_12 = arith.constant 0 : index
    %c0_13 = arith.constant 0 : index
    %17 = vector.load %arg13[%c0_12, %c0_13] : memref<16x128xf32, #tpu.memory_space<vmem>>, vector<16x128xf32>
    tpu.vector_store %arg13[%c0_12, %c0_13], %16 {strides = array<i32>} : memref<16x128xf32, #tpu.memory_space<vmem>>, vector<16x128xf32>,
    %18 = arith.truncf %16 : vector<16x128xf32> to vector<16x128xbf16>
    %c0_14 = arith.constant 0 : index
    %c0_15 = arith.constant 0 : index
    %19 = vector.load %arg6[%c0_14, %c0_15] : memref<128x128xbf16, #tpu.memory_space<vmem>>, vector<128x128xbf16>
    %cst_16 = arith.constant dense<0.000000e+00> : vector<16x128xf32>
    %20 = tpu.matmul %18, %19, %cst_16 {dimension_numbers = #tpu.dot_dimension_numbers<[1], [0], [0], [1], [0, 0, 1, 1], [], []>} : vector<16x128xbf16>, vector<128x128xbf16>, vector<16x128xf32> -> vector<16x128xf32>
    %c0_17 = arith.constant 0 : index
    %c0_18 = arith.constant 0 : index
    %21 = vector.load %arg7[%c0_17, %c0_18] : memref<1x128xf32, #tpu.memory_space<vmem>>, vector<1x128xf32>
    %22 = vector.broadcast %21 : vector<1x128xf32> to vector<16x128xf32>
    %23 = arith.addf %20, %22 : vector<16x128xf32>
    %cst_19 = arith.constant 0.000000e+00 : f32
    %24 = vector.broadcast %cst_19 : f32 to vector<16x128xf32>
    %25 = arith.maximumf %23, %24 : vector<16x128xf32>
    %26 = arith.truncf %25 : vector<16x128xf32> to vector<16x128xbf16>
    %c0_20 = arith.constant 0 : index
    %c0_21 = arith.constant 0 : index
    %27 = vector.load %arg8[%c0_20, %c0_21] : memref<128x128xbf16, #tpu.memory_space<vmem>>, vector<128x128xbf16>
    %cst_22 = arith.constant dense<0.000000e+00> : vector<16x128xf32>
    %28 = tpu.matmul %26, %27, %cst_22 {dimension_numbers = #tpu.dot_dimension_numbers<[1], [0], [0], [1], [0, 0, 1, 1], [], []>} : vector<16x128xbf16>, vector<128x128xbf16>, vector<16x128xf32> -> vector<16x128xf32>
    %c0_23 = arith.constant 0 : index
    %c0_24 = arith.constant 0 : index
    %29 = vector.load %arg9[%c0_23, %c0_24] : memref<1x128xf32, #tpu.memory_space<vmem>>, vector<1x128xf32>
    %30 = vector.broadcast %29 : vector<1x128xf32> to vector<16x128xf32>
    %31 = arith.addf %28, %30 : vector<16x128xf32>
    %cst_25 = arith.constant 0.000000e+00 : f32
    %32 = vector.broadcast %cst_25 : f32 to vector<16x128xf32>
    %33 = arith.maximumf %31, %32 : vector<16x128xf32>
    %34 = arith.truncf %33 : vector<16x128xf32> to vector<16x128xbf16>
    %c0_26 = arith.constant 0 : index
    %c0_27 = arith.constant 0 : index
    %35 = vector.load %arg10[%c0_26, %c0_27] : memref<128x256xbf16, #tpu.memory_space<vmem>>, vector<128x256xbf16>
    %cst_28 = arith.constant dense<0.000000e+00> : vector<16x256xf32>
    %36 = tpu.matmul %34, %35, %cst_28 {dimension_numbers = #tpu.dot_dimension_numbers<[1], [0], [0], [1], [0, 0, 1, 1], [], []>} : vector<16x128xbf16>, vector<128x256xbf16>, vector<16x256xf32> -> vector<16x256xf32>
    %c0_29 = arith.constant 0 : index
    %c0_30 = arith.constant 0 : index
    %37 = vector.load %arg11[%c0_29, %c0_30] : memref<1x256xf32, #tpu.memory_space<vmem>>, vector<1x256xf32>
    %38 = vector.broadcast %37 : vector<1x256xf32> to vector<16x256xf32>
    %39 = arith.addf %36, %38 : vector<16x256xf32>
    %c0_31 = arith.constant 0 : index
    %c0_32 = arith.constant 0 : index
    %40 = vector.load %arg12[%c0_31, %c0_32] : memref<16x256xf32, #tpu.memory_space<vmem>>, vector<16x256xf32>
    tpu.vector_store %arg12[%c0_31, %c0_32], %39 {strides = array<i32>} : memref<16x256xf32, #tpu.memory_space<vmem>>, vector<16x256xf32>,
    return
  }
  func.func @transform_0(%arg0: i32) -> (i32, i32) {
    %c0_i32 = arith.constant 0 : i32
    %c0_i32_0 = arith.constant 0 : i32
    return %arg0, %c0_i32 : i32, i32
  }
  func.func @transform_1(%arg0: i32) -> (i32, i32) {
    %c0_i32 = arith.constant 0 : i32
    %c0_i32_0 = arith.constant 0 : i32
    %c0_i32_1 = arith.constant 0 : i32
    return %c0_i32, %c0_i32_0 : i32, i32
  }
  func.func @transform_2(%arg0: i32) -> (i32, i32) {
    %c0_i32 = arith.constant 0 : i32
    %c0_i32_0 = arith.constant 0 : i32
    %c0_i32_1 = arith.constant 0 : i32
    return %c0_i32, %c0_i32_0 : i32, i32
  }
  func.func @transform_3(%arg0: i32) -> (i32, i32) {
    %c0_i32 = arith.constant 0 : i32
    %c0_i32_0 = arith.constant 0 : i32
    %c0_i32_1 = arith.constant 0 : i32
    return %c0_i32, %c0_i32_0 : i32, i32
  }
  func.func @transform_4(%arg0: i32) -> (i32, i32) {
    %c0_i32 = arith.constant 0 : i32
    %c0_i32_0 = arith.constant 0 : i32
    %c0_i32_1 = arith.constant 0 : i32
    return %c0_i32, %c0_i32_0 : i32, i32
  }
  func.func @transform_5(%arg0: i32) -> (i32, i32) {
    %c0_i32 = arith.constant 0 : i32
    %c0_i32_0 = arith.constant 0 : i32
    %c0_i32_1 = arith.constant 0 : i32
    return %c0_i32, %c0_i32_0 : i32, i32
  }
  func.func @transform_6(%arg0: i32) -> (i32, i32) {
    %c0_i32 = arith.constant 0 : i32
    %c0_i32_0 = arith.constant 0 : i32
    %c0_i32_1 = arith.constant 0 : i32
    return %c0_i32, %c0_i32_0 : i32, i32
  }
  func.func @transform_7(%arg0: i32) -> (i32, i32) {
    %c0_i32 = arith.constant 0 : i32
    %c0_i32_0 = arith.constant 0 : i32
    %c0_i32_1 = arith.constant 0 : i32
    return %c0_i32, %c0_i32_0 : i32, i32
  }
  func.func @transform_8(%arg0: i32) -> (i32, i32) {
    %c0_i32 = arith.constant 0 : i32
    %c0_i32_0 = arith.constant 0 : i32
    %c0_i32_1 = arith.constant 0 : i32
    return %c0_i32, %c0_i32_0 : i32, i32
  }
  func.func @transform_9(%arg0: i32) -> (i32, i32) {
    %c0_i32 = arith.constant 0 : i32
    %c0_i32_0 = arith.constant 0 : i32
    %c0_i32_1 = arith.constant 0 : i32
    return %c0_i32, %c0_i32_0 : i32, i32
  }
  func.func @transform_10(%arg0: i32) -> (i32, i32) {
    %c0_i32 = arith.constant 0 : i32
    %c0_i32_0 = arith.constant 0 : i32
    %c0_i32_1 = arith.constant 0 : i32
    return %c0_i32, %c0_i32_0 : i32, i32
  }
  func.func @transform_11(%arg0: i32) -> (i32, i32) {
    %c0_i32 = arith.constant 0 : i32
    %c0_i32_0 = arith.constant 0 : i32
    return %arg0, %c0_i32 : i32, i32
  }
  func.func @transform_12(%arg0: i32) -> (i32, i32) {
    %c0_i32 = arith.constant 0 : i32
    %c0_i32_0 = arith.constant 0 : i32
    return %arg0, %c0_i32 : i32, i32
  }
}

</mosaic_0001>

<llo_original>
// kernel: tpu_custom_call.1
$region0: #{tpu_custom_call.1}
  #allocation0 [shape = 'u32[]', space=smem, size = 0x4, offset = 0x4, fixed_abs, tag = 'smem constant byte address 0x4 - core index']
  #allocation1 [shape = 'u32[144,128]{1,0:T(1,128)}', space=vmem, size = 0x12000, scoped, tag = 'internal scratch']
  %s0 = inlined_call_operand.hbm [shape: f32[16,256], index: 0, kind: input, shape index: {}]
  %s1 = inlined_call_operand.hbm [shape: bf16[256,128], index: 1, kind: input, shape index: {}]
  %s2 = inlined_call_operand.vmem [shape: f32[1,128], index: 2, kind: input, shape index: {}]
  %s3 = inlined_call_operand.hbm [shape: bf16[128,128], index: 3, kind: input, shape index: {}]
  %s4 = inlined_call_operand.vmem [shape: f32[1,128], index: 4, kind: input, shape index: {}]
  %s5 = inlined_call_operand.hbm [shape: bf16[128,128], index: 5, kind: input, shape index: {}]
  %s6 = inlined_call_operand.vmem [shape: f32[1,128], index: 6, kind: input, shape index: {}]
  %s7 = inlined_call_operand.hbm [shape: bf16[128,128], index: 7, kind: input, shape index: {}]
  %s8 = inlined_call_operand.vmem [shape: f32[1,128], index: 8, kind: input, shape index: {}]
  %s9 = inlined_call_operand.hbm [shape: bf16[128,256], index: 9, kind: input, shape index: {}]
  %s10 = inlined_call_operand.vmem [shape: f32[1,256], index: 10, kind: input, shape index: {}]
  %s11 = inlined_call_operand.hbm [shape: f32[16,256], index: 11, kind: output, shape index: {0}]
  %s12 = inlined_call_operand.hbm [shape: f32[16,128], index: 12, kind: output, shape index: {1}]
  %13 = xla_tuple %s11, %s12
  %s14 = sld [smem:[#allocation0]]
  $region86: #{tpu_custom_call.1} parent=0
    _
  %s16 = ssub.s32 1, %s14
  %s17 = scalar_select 0, %s16, %s14
  $region1: #{tpu_custom_call.1} parent=0
    #allocation2 [shape = 'u8[16384]{0}', space=vmem, size = 0x4000, scoped, tag = 'input window, operand 0, single buffered']
    #allocation3 [shape = 's32[1]{0}', space=sflag, size = 0x4, scoped, tag = 'scoped memory for tpu_custom_call.1']
    #allocation4 [shape = 's32[1]{0}', space=sflag, size = 0x4, scoped, tag = 'scoped memory for tpu_custom_call.1']
    #allocation5 [shape = 'u8[65536]{0}', space=vmem, size = 0x10000, scoped, tag = 'input window, operand 1, single buffered']
    #allocation6 [shape = 's32[1]{0}', space=sflag, size = 0x4, scoped, tag = 'scoped memory for tpu_custom_call.1']
    #allocation7 [shape = 'u8[32768]{0}', space=vmem, size = 0x8000, scoped, tag = 'input window, operand 3, single buffered']
    #allocation8 [shape = 'u8[32768]{0}', space=vmem, size = 0x8000, scoped, tag = 'input window, operand 5, single buffered']
    #allocation9 [shape = 's32[1]{0}', space=sflag, size = 0x4, scoped, tag = 'scoped memory for tpu_custom_call.1']
    #allocation10 [shape = 'u8[32768]{0}', space=vmem, size = 0x8000, scoped, tag = 'input window, operand 7, single buffered']
    #allocation11 [shape = 'u8[65536]{0}', space=vmem, size = 0x10000, scoped, tag = 'input window, operand 9, single buffered']
    #allocation12 [shape = 's32[1]{0}', space=sflag, size = 0x4, scoped, tag = 'scoped memory for tpu_custom_call.1']
    #allocation13 [shape = 'u8[16384]{0}', space=vmem, size = 0x4000, scoped, tag = 'output window, operand 0, single buffered']
    #allocation14 [shape = 'u8[8192]{0}', space=vmem, size = 0x2000, scoped, tag = 'output window, operand 1, single buffered']
    #allocation15 [shape = 's32[1]{0}', space=sflag, size = 0x4, scoped, tag = 'scoped memory for tpu_custom_call.1']
    %18 = vsyncpa [#allocation3], 0
    %19 = vsyncpa [#allocation6], 0
    %20 = vsyncpa [#allocation9], 0
    %21 = vsyncpa [#allocation12], 0
    %22 = vsyncpa [#allocation4], 0
    %23 = vsyncpa [#allocation15], 0
    // Predicated region
    $region2: #{tpu_custom_call.1} parent=1 // pred_check
      _
    $region3: #{tpu_custom_call.1} parent=1 // pred_check_branch
      %25 = sbr.rel (0) target = $region5
    $region4: #{tpu_custom_call.1} parent=1 // pred_region
      %s27 = ssub.s32 512, 512
      %28 = vsyncadd [#allocation3], %s27
      %s29 = sshll.u32 [#allocation2], 4
      %s30 = int_to_ptr.vmem [resolvable:$true] %s29
      %35 = dma.hbm_to_vmem [thread:$0]  %s0, 512, %s30, [#allocation3], 256, 256, 16
    $region5: #{tpu_custom_call.1} parent=1 // pred_fallthru
      _
    // Predicated region
    $region6: #{tpu_custom_call.1} parent=1 // pred_check
      _
    $region7: #{tpu_custom_call.1} parent=1 // pred_check_branch
      %37 = sbr.rel (0) target = $region9
    $region8: #{tpu_custom_call.1} parent=1 // pred_region
      %s39 = ssub.s32 2048, 2048
      %40 = vsyncadd [#allocation6], %s39
      %s41 = sshll.u32 [#allocation5], 4
      %s42 = int_to_ptr.vmem [resolvable:$true] %s41
      %47 = dma.hbm_to_vmem [thread:$0]  %s1, 2048, %s42, [#allocation6], 64, 64, 4
    $region9: #{tpu_custom_call.1} parent=1 // pred_fallthru
      _
    // Predicated region
    $region10: #{tpu_custom_call.1} parent=1 // pred_check
      _
    $region11: #{tpu_custom_call.1} parent=1 // pred_check_branch
      %49 = sbr.rel (0) target = $region13
    $region12: #{tpu_custom_call.1} parent=1 // pred_region
      _
    $region13: #{tpu_custom_call.1} parent=1 // pred_fallthru
      _
    // Predicated region
    $region14: #{tpu_custom_call.1} parent=1 // pred_check
      _
    $region15: #{tpu_custom_call.1} parent=1 // pred_check_branch
      %51 = sbr.rel (0) target = $region17
    $region16: #{tpu_custom_call.1} parent=1 // pred_region
      %s53 = ssub.s32 1024, 1024
      %54 = vsyncadd [#allocation6], %s53
      %s55 = sshll.u32 [#allocation7], 4
      %s56 = int_to_ptr.vmem [resolvable:$true] %s55
      %61 = dma.hbm_to_vmem [thread:$0]  %s3, 1024, %s56, [#allocation6], 64, 64, 4
    $region17: #{tpu_custom_call.1} parent=1 // pred_fallthru
      _
    // Predicated region
    $region18: #{tpu_custom_call.1} parent=1 // pred_check
      _
    $region19: #{tpu_custom_call.1} parent=1 // pred_check_branch
      %63 = sbr.rel (0) target = $region21
    $region20: #{tpu_custom_call.1} parent=1 // pred_region
      _
    $region21: #{tpu_custom_call.1} parent=1 // pred_fallthru
      _
    // Predicated region
    $region22: #{tpu_custom_call.1} parent=1 // pred_check
      _
    $region23: #{tpu_custom_call.1} parent=1 // pred_check_branch
      %65 = sbr.rel (0) target = $region25
    $region24: #{tpu_custom_call.1} parent=1 // pred_region
      %s67 = ssub.s32 1024, 1024
      %68 = vsyncadd [#allocation9], %s67
      %s69 = sshll.u32 [#allocation8], 4
      %s70 = int_to_ptr.vmem [resolvable:$true] %s69
      %75 = dma.hbm_to_vmem [thread:$0]  %s5, 1024, %s70, [#allocation9], 64, 64, 4
    $region25: #{tpu_custom_call.1} parent=1 // pred_fallthru
      _
    // Predicated region
    $region26: #{tpu_custom_call.1} parent=1 // pred_check
      _
    $region27: #{tpu_custom_call.1} parent=1 // pred_check_branch
      %77 = sbr.rel (0) target = $region29
    $region28: #{tpu_custom_call.1} parent=1 // pred_region
      _
    $region29: #{tpu_custom_call.1} parent=1 // pred_fallthru
      _
    // Predicated region
    $region30: #{tpu_custom_call.1} parent=1 // pred_check
      _
    $region31: #{tpu_custom_call.1} parent=1 // pred_check_branch
      %79 = sbr.rel (0) target = $region33
    $region32: #{tpu_custom_call.1} parent=1 // pred_region
      %s81 = ssub.s32 1024, 1024
      %82 = vsyncadd [#allocation9], %s81
      %s83 = sshll.u32 [#allocation10], 4
      %s84 = int_to_ptr.vmem [resolvable:$true] %s83
      %89 = dma.hbm_to_vmem [thread:$0]  %s7, 1024, %s84, [#allocation9], 64, 64, 4
    $region33: #{tpu_custom_call.1} parent=1 // pred_fallthru
      _
    // Predicated region
    $region34: #{tpu_custom_call.1} parent=1 // pred_check
      _
    $region35: #{tpu_custom_call.1} parent=1 // pred_check_branch
      %91 = sbr.rel (0) target = $region37
    $region36: #{tpu_custom_call.1} parent=1 // pred_region
      _
    $region37: #{tpu_custom_call.1} parent=1 // pred_fallthru
      _
    // Predicated region
    $region38: #{tpu_custom_call.1} parent=1 // pred_check
      _
    $region39: #{tpu_custom_call.1} parent=1 // pred_check_branch
      %93 = sbr.rel (0) target = $region41
    $region40: #{tpu_custom_call.1} parent=1 // pred_region
      %s95 = ssub.s32 2048, 2048
      %96 = vsyncadd [#allocation12], %s95
      %s97 = sshll.u32 [#allocation11], 4
      %s98 = int_to_ptr.vmem [resolvable:$true] %s97
      %103 = dma.hbm_to_vmem [thread:$0]  %s9, 2048, %s98, [#allocation12], 128, 128, 8
    $region41: #{tpu_custom_call.1} parent=1 // pred_fallthru
      _
    // Predicated region
    $region42: #{tpu_custom_call.1} parent=1 // pred_check
      _
    $region43: #{tpu_custom_call.1} parent=1 // pred_check_branch
      %105 = sbr.rel (0) target = $region45
    $region44: #{tpu_custom_call.1} parent=1 // pred_region
      _
    $region45: #{tpu_custom_call.1} parent=1 // pred_fallthru
      _
    // Predicated region
    $region46: #{tpu_custom_call.1} parent=1 // pred_check
      _
    $region47: #{tpu_custom_call.1} parent=1 // pred_check_branch
      %107 = sbr.rel (0) target = $region49
    $region48: #{tpu_custom_call.1} parent=1 // pred_region
      %108 = dma.done [#allocation3], 512
    $region49: #{tpu_custom_call.1} parent=1 // pred_fallthru
      _
    // Predicated region
    $region50: #{tpu_custom_call.1} parent=1 // pred_check
      _
    $region51: #{tpu_custom_call.1} parent=1 // pred_check_branch
      %110 = sbr.rel (0) target = $region53
    $region52: #{tpu_custom_call.1} parent=1 // pred_region
      %111 = dma.done [#allocation6], 2048
    $region53: #{tpu_custom_call.1} parent=1 // pred_fallthru
      _
    // Predicated region
    $region54: #{tpu_custom_call.1} parent=1 // pred_check
      _
    $region55: #{tpu_custom_call.1} parent=1 // pred_check_branch
      %113 = sbr.rel (0) target = $region57
    $region56: #{tpu_custom_call.1} parent=1 // pred_region
      %114 = dma.done [#allocation6], 1024
    $region57: #{tpu_custom_call.1} parent=1 // pred_fallthru
      _
    // Predicated region
    $region58: #{tpu_custom_call.1} parent=1 // pred_check
      _
    $region59: #{tpu_custom_call.1} parent=1 // pred_check_branch
      %116 = sbr.rel (0) target = $region61
    $region60: #{tpu_custom_call.1} parent=1 // pred_region
      %117 = dma.done [#allocation9], 1024
    $region61: #{tpu_custom_call.1} parent=1 // pred_fallthru
      _
    // Predicated region
    $region62: #{tpu_custom_call.1} parent=1 // pred_check
      _
    $region63: #{tpu_custom_call.1} parent=1 // pred_check_branch
      %119 = sbr.rel (0) target = $region65
    $region64: #{tpu_custom_call.1} parent=1 // pred_region
      %120 = dma.done [#allocation9], 1024
    $region65: #{tpu_custom_call.1} parent=1 // pred_fallthru
      _
    // Predicated region
    $region66: #{tpu_custom_call.1} parent=1 // pred_check
      _
    $region67: #{tpu_custom_call.1} parent=1 // pred_check_branch
      %122 = sbr.rel (0) target = $region69
    $region68: #{tpu_custom_call.1} parent=1 // pred_region
      %123 = dma.done [#allocation12], 2048
    $region69: #{tpu_custom_call.1} parent=1 // pred_fallthru
      _
    %v125 = vld [vmem:[#allocation2] sm:$0xff]
    %v126 = vld [vmem:[#allocation2 + $0x8] sm:$0xff]
    %v127 = vld [vmem:[#allocation2 + $0x10] sm:$0xff]
    %v128 = vld [vmem:[#allocation2 + $0x18] sm:$0xff]
    %v129 = vpack.c.bf16 %v127, %v125
    %v130 = vpack.c.bf16 %v128, %v126
    %v131 = vld [vmem:[#allocation5] sm:$0xf]
    %v132 = vld [vmem:[#allocation5 + $0x4] sm:$0xf]
    %v133 = vld [vmem:[#allocation5 + $0x8] sm:$0xf]
    %v134 = vld [vmem:[#allocation5 + $0xc] sm:$0xf]
    %v135 = vld [vmem:[#allocation5 + $0x10] sm:$0xf]
    %v136 = vld [vmem:[#allocation5 + $0x14] sm:$0xf]
    %v137 = vld [vmem:[#allocation5 + $0x18] sm:$0xf]
    %v138 = vld [vmem:[#allocation5 + $0x1c] sm:$0xf]
    %v139 = vld [vmem:[#allocation5 + $0x20] sm:$0xf]
    %v140 = vld [vmem:[#allocation5 + $0x24] sm:$0xf]
    %v141 = vld [vmem:[#allocation5 + $0x28] sm:$0xf]
    %v142 = vld [vmem:[#allocation5 + $0x2c] sm:$0xf]
    %v143 = vld [vmem:[#allocation5 + $0x30] sm:$0xf]
    %v144 = vld [vmem:[#allocation5 + $0x34] sm:$0xf]
    %v145 = vld [vmem:[#allocation5 + $0x38] sm:$0xf]
    %v146 = vld [vmem:[#allocation5 + $0x3c] sm:$0xf]
    %v147 = vld [vmem:[#allocation5 + $0x40] sm:$0xf]
    %v148 = vld [vmem:[#allocation5 + $0x44] sm:$0xf]
    %v149 = vld [vmem:[#allocation5 + $0x48] sm:$0xf]
    %v150 = vld [vmem:[#allocation5 + $0x4c] sm:$0xf]
    %v151 = vld [vmem:[#allocation5 + $0x50] sm:$0xf]
    %v152 = vld [vmem:[#allocation5 + $0x54] sm:$0xf]
    %v153 = vld [vmem:[#allocation5 + $0x58] sm:$0xf]
    %v154 = vld [vmem:[#allocation5 + $0x5c] sm:$0xf]
    %v155 = vld [vmem:[#allocation5 + $0x60] sm:$0xf]
    %v156 = vld [vmem:[#allocation5 + $0x64] sm:$0xf]
    %v157 = vld [vmem:[#allocation5 + $0x68] sm:$0xf]
    %v158 = vld [vmem:[#allocation5 + $0x6c] sm:$0xf]
    %v159 = vld [vmem:[#allocation5 + $0x70] sm:$0xf]
    %v160 = vld [vmem:[#allocation5 + $0x74] sm:$0xf]
    %v161 = vld [vmem:[#allocation5 + $0x78] sm:$0xf]
    %v162 = vld [vmem:[#allocation5 + $0x7c] sm:$0xf]
    %v163 = vld [vmem:[%s2] sm:$0x1]
    %v165 = vlaneseq
    %v166 = vshrl.u32 %v165, 7
    %v167 = vsub.s32 0, %v166
    %v168 = vrot.slane %v163, %v167
    %v202 = vunpack.c.l.b16 %v131
    %v203 = vunpack.c.l.b16 %v132
    %v204 = vunpack.c.l.b16 %v133
    %v205 = vunpack.c.l.b16 %v134
    %v206 = vunpack.c.l.b16 %v135
    %v207 = vunpack.c.l.b16 %v136
    %v208 = vunpack.c.l.b16 %v137
    %v209 = vunpack.c.l.b16 %v138
    %v210 = vunpack.c.l.b16 %v139
    %v211 = vunpack.c.l.b16 %v140
    %v212 = vunpack.c.l.b16 %v141
    %v213 = vunpack.c.l.b16 %v142
    %v214 = vunpack.c.l.b16 %v143
    %v215 = vunpack.c.l.b16 %v144
    %v216 = vunpack.c.l.b16 %v145
    %v217 = vunpack.c.l.b16 %v146
    %v218 = vunpack.c.l.b16 %v147
    %v219 = vunpack.c.l.b16 %v148
    %v220 = vunpack.c.l.b16 %v149
    %v221 = vunpack.c.l.b16 %v150
    %v222 = vunpack.c.l.b16 %v151
    %v223 = vunpack.c.l.b16 %v152
    %v224 = vunpack.c.l.b16 %v153
    %v225 = vunpack.c.l.b16 %v154
    %v226 = vunpack.c.l.b16 %v155
    %v227 = vunpack.c.l.b16 %v156
    %v228 = vunpack.c.l.b16 %v157
    %v229 = vunpack.c.l.b16 %v158
    %v230 = vunpack.c.l.b16 %v159
    %v231 = vunpack.c.l.b16 %v160
    %v232 = vunpack.c.l.b16 %v161
    %v233 = vunpack.c.l.b16 %v162
    %v234 = vpack.c.b16 %v203, %v202
    %v235 = vpack.c.b16 %v205, %v204
    %v236 = vpack.c.b16 %v207, %v206
    %v237 = vpack.c.b16 %v209, %v208
    %v238 = vpack.c.b16 %v211, %v210
    %v239 = vpack.c.b16 %v213, %v212
    %v240 = vpack.c.b16 %v215, %v214
    %v241 = vpack.c.b16 %v217, %v216
    %v242 = vpack.c.b16 %v219, %v218
    %v243 = vpack.c.b16 %v221, %v220
    %v244 = vpack.c.b16 %v223, %v222
    %v245 = vpack.c.b16 %v225, %v224
    %v246 = vpack.c.b16 %v227, %v226
    %v247 = vpack.c.b16 %v229, %v228
    %v248 = vpack.c.b16 %v231, %v230
    %v249 = vpack.c.b16 %v233, %v232
    %266 = vmatprep.subr.bf16.mxu0 0
    %267 = vmatpush1.bf16.msra.mxu0 %v234
    %268 = vmatprep.subr.bf16.mxu0 0
    %269 = vmatpush1.bf16.msra.mxu0 %v235
    %270 = vmatprep.subr.bf16.mxu0 0
    %271 = vmatpush1.bf16.msra.mxu0 %v236
    %272 = vmatprep.subr.bf16.mxu0 0
    %273 = vmatpush1.bf16.msra.mxu0 %v237
    %274 = vmatprep.subr.bf16.mxu0 0
    %275 = vmatpush1.bf16.msra.mxu0 %v238
    %276 = vmatprep.subr.bf16.mxu0 0
    %277 = vmatpush1.bf16.msra.mxu0 %v239
    %278 = vmatprep.subr.bf16.mxu0 0
    %279 = vmatpush1.bf16.msra.mxu0 %v240
    %280 = vmatprep.subr.bf16.mxu0 0
    %281 = vmatpush1.bf16.msra.mxu0 %v241
    %282 = vmatprep.subr.bf16.mxu0 0
    %283 = vmatpush1.bf16.msra.mxu0 %v242
    %284 = vmatprep.subr.bf16.mxu0 0
    %285 = vmatpush1.bf16.msra.mxu0 %v243
    %286 = vmatprep.subr.bf16.mxu0 0
    %287 = vmatpush1.bf16.msra.mxu0 %v244
    %288 = vmatprep.subr.bf16.mxu0 0
    %289 = vmatpush1.bf16.msra.mxu0 %v245
    %290 = vmatprep.subr.bf16.mxu0 0
    %291 = vmatpush1.bf16.msra.mxu0 %v246
    %292 = vmatprep.subr.bf16.mxu0 0
    %293 = vmatpush1.bf16.msra.mxu0 %v247
    %294 = vmatprep.subr.bf16.mxu0 0
    %295 = vmatpush1.bf16.msra.mxu0 %v248
    %296 = vmatprep.subr.bf16.mxu0 0
    %297 = vmatpush1.bf16.msra.mxu0 %v249
    %298 = vmatprep.mubr.bf16.mxu0 %v130
    %299 = vmatmul.mubr.bf16.gmra.mrb[0].mxu0 %v129
    %v300 = vpop.f32.mrb[0].mxu0
    %v301 = vadd.f32 %v168, %v300
    %v302 = vpop.f32.mrb[0].mxu0
    %v303 = vpop.f32.mrb[0].mxu0
    %v304 = vadd.f32 %v168, %v303
    %v305 = vpop.f32.mrb[0].mxu0
    %306 = vdwg.mxu0
    %v307 = vmax.f32 %v301, 0.0
    %v308 = vmax.f32 %v304, 0.0
    %v309 = vpack.c.bf16 %v308, %v307
    %v310 = vld [vmem:[#allocation7] sm:$0xf]
    %v311 = vld [vmem:[#allocation7 + $0x4] sm:$0xf]
    %v312 = vld [vmem:[#allocation7 + $0x8] sm:$0xf]
    %v313 = vld [vmem:[#allocation7 + $0xc] sm:$0xf]
    %v314 = vld [vmem:[#allocation7 + $0x10] sm:$0xf]
    %v315 = vld [vmem:[#allocation7 + $0x14] sm:$0xf]
    %v316 = vld [vmem:[#allocation7 + $0x18] sm:$0xf]
    %v317 = vld [vmem:[#allocation7 + $0x1c] sm:$0xf]
    %v318 = vld [vmem:[#allocation7 + $0x20] sm:$0xf]
    %v319 = vld [vmem:[#allocation7 + $0x24] sm:$0xf]
    %v320 = vld [vmem:[#allocation7 + $0x28] sm:$0xf]
    %v321 = vld [vmem:[#allocation7 + $0x2c] sm:$0xf]
    %v322 = vld [vmem:[#allocation7 + $0x30] sm:$0xf]
    %v323 = vld [vmem:[#allocation7 + $0x34] sm:$0xf]
    %v324 = vld [vmem:[#allocation7 + $0x38] sm:$0xf]
    %v325 = vld [vmem:[#allocation7 + $0x3c] sm:$0xf]
    %v326 = vld [vmem:[%s4] sm:$0x1]
    %v328 = vlaneseq
    %v329 = vshrl.u32 %v328, 7
    %v330 = vsub.s32 0, %v329
    %v331 = vrot.slane %v326, %v330
    %v349 = vunpack.c.l.b16 %v310
    %v350 = vunpack.c.l.b16 %v311
    %v351 = vunpack.c.l.b16 %v312
    %v352 = vunpack.c.l.b16 %v313
    %v353 = vunpack.c.l.b16 %v314
    %v354 = vunpack.c.l.b16 %v315
    %v355 = vunpack.c.l.b16 %v316
    %v356 = vunpack.c.l.b16 %v317
    %v357 = vunpack.c.l.b16 %v318
    %v358 = vunpack.c.l.b16 %v319
    %v359 = vunpack.c.l.b16 %v320
    %v360 = vunpack.c.l.b16 %v321
    %v361 = vunpack.c.l.b16 %v322
    %v362 = vunpack.c.l.b16 %v323
    %v363 = vunpack.c.l.b16 %v324
    %v364 = vunpack.c.l.b16 %v325
    %v365 = vpack.c.b16 %v350, %v349
    %v366 = vpack.c.b16 %v352, %v351
    %v367 = vpack.c.b16 %v354, %v353
    %v368 = vpack.c.b16 %v356, %v355
    %v369 = vpack.c.b16 %v358, %v357
    %v370 = vpack.c.b16 %v360, %v359
    %v371 = vpack.c.b16 %v362, %v361
    %v372 = vpack.c.b16 %v364, %v363
    %381 = vmatprep.subr.bf16.mxu0 0
    %382 = vmatpush1.bf16.msra.mxu0 %v365
    %383 = vmatprep.subr.bf16.mxu0 0
    %384 = vmatpush1.bf16.msra.mxu0 %v366
    %385 = vmatprep.subr.bf16.mxu0 0
    %386 = vmatpush1.bf16.msra.mxu0 %v367
    %387 = vmatprep.subr.bf16.mxu0 0
    %388 = vmatpush1.bf16.msra.mxu0 %v368
    %389 = vmatprep.subr.bf16.mxu0 0
    %390 = vmatpush1.bf16.msra.mxu0 %v369
    %391 = vmatprep.subr.bf16.mxu0 0
    %392 = vmatpush1.bf16.msra.mxu0 %v370
    %393 = vmatprep.subr.bf16.mxu0 0
    %394 = vmatpush1.bf16.msra.mxu0 %v371
    %395 = vmatprep.subr.bf16.mxu0 0
    %396 = vmatpush1.bf16.msra.mxu0 %v372
    %397 = vmatprep.subr.bf16.mxu0 0
    %398 = vmatpush1.bf16.msra.mxu0 0
    %399 = vmatprep.subr.bf16.mxu0 0
    %400 = vmatpush1.bf16.msra.mxu0 0
    %401 = vmatprep.subr.bf16.mxu0 0
    %402 = vmatpush1.bf16.msra.mxu0 0
    %403 = vmatprep.subr.bf16.mxu0 0
    %404 = vmatpush1.bf16.msra.mxu0 0
    %405 = vmatprep.subr.bf16.mxu0 0
    %406 = vmatpush1.bf16.msra.mxu0 0
    %407 = vmatprep.subr.bf16.mxu0 0
    %408 = vmatpush1.bf16.msra.mxu0 0
    %409 = vmatprep.subr.bf16.mxu0 0
    %410 = vmatpush1.bf16.msra.mxu0 0
    %411 = vmatprep.subr.bf16.mxu0 0
    %412 = vmatpush1.bf16.msra.mxu0 0
    %413 = vmatprep.mubr.bf16.mxu0 0
    %414 = vmatmul.mubr.bf16.gmra.mrb[0].mxu0 %v309
    %v415 = vpop.f32.mrb[0].mxu0
    %v416 = vadd.f32 %v331, %v415
    %v417 = vpop.f32.mrb[0].mxu0
    %v418 = vpop.f32.mrb[0].mxu0
    %v419 = vadd.f32 %v331, %v418
    %v420 = vpop.f32.mrb[0].mxu0
    %421 = vdwg.mxu0
    %v422 = vmax.f32 %v416, 0.0
    %v423 = vmax.f32 %v419, 0.0
    %424 = vst [vmem:[#allocation14] sm:$0xff] %v422
    %425 = vst [vmem:[#allocation14 + $0x8] sm:$0xff] %v423
    %v426 = vpack.c.bf16 %v423, %v422
    %v427 = vld [vmem:[#allocation8] sm:$0xf]
    %v428 = vld [vmem:[#allocation8 + $0x4] sm:$0xf]
    %v429 = vld [vmem:[#allocation8 + $0x8] sm:$0xf]
    %v430 = vld [vmem:[#allocation8 + $0xc] sm:$0xf]
    %v431 = vld [vmem:[#allocation8 + $0x10] sm:$0xf]
    %v432 = vld [vmem:[#allocation8 + $0x14] sm:$0xf]
    %v433 = vld [vmem:[#allocation8 + $0x18] sm:$0xf]
    %v434 = vld [vmem:[#allocation8 + $0x1c] sm:$0xf]
    %v435 = vld [vmem:[#allocation8 + $0x20] sm:$0xf]
    %v436 = vld [vmem:[#allocation8 + $0x24] sm:$0xf]
    %v437 = vld [vmem:[#allocation8 + $0x28] sm:$0xf]
    %v438 = vld [vmem:[#allocation8 + $0x2c] sm:$0xf]
    %v439 = vld [vmem:[#allocation8 + $0x30] sm:$0xf]
    %v440 = vld [vmem:[#allocation8 + $0x34] sm:$0xf]
    %v441 = vld [vmem:[#allocation8 + $0x38] sm:$0xf]
    %v442 = vld [vmem:[#allocation8 + $0x3c] sm:$0xf]
    %v443 = vld [vmem:[%s6] sm:$0x1]
    %v445 = vlaneseq
    %v446 = vshrl.u32 %v445, 7
    %v447 = vsub.s32 0, %v446
    %v448 = vrot.slane %v443, %v447
    %v466 = vunpack.c.l.b16 %v427
    %v467 = vunpack.c.l.b16 %v428
    %v468 = vunpack.c.l.b16 %v429
    %v469 = vunpack.c.l.b16 %v430
    %v470 = vunpack.c.l.b16 %v431
    %v471 = vunpack.c.l.b16 %v432
    %v472 = vunpack.c.l.b16 %v433
    %v473 = vunpack.c.l.b16 %v434
    %v474 = vunpack.c.l.b16 %v435
    %v475 = vunpack.c.l.b16 %v436
    %v476 = vunpack.c.l.b16 %v437
    %v477 = vunpack.c.l.b16 %v438
    %v478 = vunpack.c.l.b16 %v439
    %v479 = vunpack.c.l.b16 %v440
    %v480 = vunpack.c.l.b16 %v441
    %v481 = vunpack.c.l.b16 %v442
    %v482 = vpack.c.b16 %v467, %v466
    %v483 = vpack.c.b16 %v469, %v468
    %v484 = vpack.c.b16 %v471, %v470
    %v485 = vpack.c.b16 %v473, %v472
    %v486 = vpack.c.b16 %v475, %v474
    %v487 = vpack.c.b16 %v477, %v476
    %v488 = vpack.c.b16 %v479, %v478
    %v489 = vpack.c.b16 %v481, %v480
    %498 = vmatprep.subr.bf16.mxu0 0
    %499 = vmatpush1.bf16.msra.mxu0 %v482
    %500 = vmatprep.subr.bf16.mxu0 0
    %501 = vmatpush1.bf16.msra.mxu0 %v483
    %502 = vmatprep.subr.bf16.mxu0 0
    %503 = vmatpush1.bf16.msra.mxu0 %v484
    %504 = vmatprep.subr.bf16.mxu0 0
    %505 = vmatpush1.bf16.msra.mxu0 %v485
    %506 = vmatprep.subr.bf16.mxu0 0
    %507 = vmatpush1.bf16.msra.mxu0 %v486
    %508 = vmatprep.subr.bf16.mxu0 0
    %509 = vmatpush1.bf16.msra.mxu0 %v487
    %510 = vmatprep.subr.bf16.mxu0 0
    %511 = vmatpush1.bf16.msra.mxu0 %v488
    %512 = vmatprep.subr.bf16.mxu0 0
    %513 = vmatpush1.bf16.msra.mxu0 %v489
    %514 = vmatprep.subr.bf16.mxu0 0
    %515 = vmatpush1.bf16.msra.mxu0 0
    %516 = vmatprep.subr.bf16.mxu0 0
    %517 = vmatpush1.bf16.msra.mxu0 0
    %518 = vmatprep.subr.bf16.mxu0 0
    %519 = vmatpush1.bf16.msra.mxu0 0
    %520 = vmatprep.subr.bf16.mxu0 0
    %521 = vmatpush1.bf16.msra.mxu0 0
    %522 = vmatprep.subr.bf16.mxu0 0
    %523 = vmatpush1.bf16.msra.mxu0 0
    %524 = vmatprep.subr.bf16.mxu0 0
    %525 = vmatpush1.bf16.msra.mxu0 0
    %526 = vmatprep.subr.bf16.mxu0 0
    %527 = vmatpush1.bf16.msra.mxu0 0
    %528 = vmatprep.subr.bf16.mxu0 0
    %529 = vmatpush1.bf16.msra.mxu0 0
    %530 = vmatprep.mubr.bf16.mxu0 0
    %531 = vmatmul.mubr.bf16.gmra.mrb[0].mxu0 %v426
    %v532 = vpop.f32.mrb[0].mxu0
    %v533 = vadd.f32 %v448, %v532
    %v534 = vpop.f32.mrb[0].mxu0
    %v535 = vpop.f32.mrb[0].mxu0
    %v536 = vadd.f32 %v448, %v535
    %v537 = vpop.f32.mrb[0].mxu0
    %538 = vdwg.mxu0
    %v539 = vmax.f32 %v533, 0.0
    %v540 = vmax.f32 %v536, 0.0
    %v541 = vpack.c.bf16 %v540, %v539
    %v542 = vld [vmem:[#allocation10] sm:$0xf]
    %v543 = vld [vmem:[#allocation10 + $0x4] sm:$0xf]
    %v544 = vld [vmem:[#allocation10 + $0x8] sm:$0xf]
    %v545 = vld [vmem:[#allocation10 + $0xc] sm:$0xf]
    %v546 = vld [vmem:[#allocation10 + $0x10] sm:$0xf]
    %v547 = vld [vmem:[#allocation10 + $0x14] sm:$0xf]
    %v548 = vld [vmem:[#allocation10 + $0x18] sm:$0xf]
    %v549 = vld [vmem:[#allocation10 + $0x1c] sm:$0xf]
    %v550 = vld [vmem:[#allocation10 + $0x20] sm:$0xf]
    %v551 = vld [vmem:[#allocation10 + $0x24] sm:$0xf]
    %v552 = vld [vmem:[#allocation10 + $0x28] sm:$0xf]
    %v553 = vld [vmem:[#allocation10 + $0x2c] sm:$0xf]
    %v554 = vld [vmem:[#allocation10 + $0x30] sm:$0xf]
    %v555 = vld [vmem:[#allocation10 + $0x34] sm:$0xf]
    %v556 = vld [vmem:[#allocation10 + $0x38] sm:$0xf]
    %v557 = vld [vmem:[#allocation10 + $0x3c] sm:$0xf]
    %v558 = vld [vmem:[%s8] sm:$0x1]
    %v560 = vlaneseq
    %v561 = vshrl.u32 %v560, 7
    %v562 = vsub.s32 0, %v561
    %v563 = vrot.slane %v558, %v562
    %v581 = vunpack.c.l.b16 %v542
    %v582 = vunpack.c.l.b16 %v543
    %v583 = vunpack.c.l.b16 %v544
    %v584 = vunpack.c.l.b16 %v545
    %v585 = vunpack.c.l.b16 %v546
    %v586 = vunpack.c.l.b16 %v547
    %v587 = vunpack.c.l.b16 %v548
    %v588 = vunpack.c.l.b16 %v549
    %v589 = vunpack.c.l.b16 %v550
    %v590 = vunpack.c.l.b16 %v551
    %v591 = vunpack.c.l.b16 %v552
    %v592 = vunpack.c.l.b16 %v553
    %v593 = vunpack.c.l.b16 %v554
    %v594 = vunpack.c.l.b16 %v555
    %v595 = vunpack.c.l.b16 %v556
    %v596 = vunpack.c.l.b16 %v557
    %v597 = vpack.c.b16 %v582, %v581
    %v598 = vpack.c.b16 %v584, %v583
    %v599 = vpack.c.b16 %v586, %v585
    %v600 = vpack.c.b16 %v588, %v587
    %v601 = vpack.c.b16 %v590, %v589
    %v602 = vpack.c.b16 %v592, %v591
    %v603 = vpack.c.b16 %v594, %v593
    %v604 = vpack.c.b16 %v596, %v595
    %613 = vmatprep.subr.bf16.mxu0 0
    %614 = vmatpush1.bf16.msra.mxu0 %v597
    %615 = vmatprep.subr.bf16.mxu0 0
    %616 = vmatpush1.bf16.msra.mxu0 %v598
    %617 = vmatprep.subr.bf16.mxu0 0
    %618 = vmatpush1.bf16.msra.mxu0 %v599
    %619 = vmatprep.subr.bf16.mxu0 0
    %620 = vmatpush1.bf16.msra.mxu0 %v600
    %621 = vmatprep.subr.bf16.mxu0 0
    %622 = vmatpush1.bf16.msra.mxu0 %v601
    %623 = vmatprep.subr.bf16.mxu0 0
    %624 = vmatpush1.bf16.msra.mxu0 %v602
    %625 = vmatprep.subr.bf16.mxu0 0
    %626 = vmatpush1.bf16.msra.mxu0 %v603
    %627 = vmatprep.subr.bf16.mxu0 0
    %628 = vmatpush1.bf16.msra.mxu0 %v604
    %629 = vmatprep.subr.bf16.mxu0 0
    %630 = vmatpush1.bf16.msra.mxu0 0
    %631 = vmatprep.subr.bf16.mxu0 0
    %632 = vmatpush1.bf16.msra.mxu0 0
    %633 = vmatprep.subr.bf16.mxu0 0
    %634 = vmatpush1.bf16.msra.mxu0 0
    %635 = vmatprep.subr.bf16.mxu0 0
    %636 = vmatpush1.bf16.msra.mxu0 0
    %637 = vmatprep.subr.bf16.mxu0 0
    %638 = vmatpush1.bf16.msra.mxu0 0
    %639 = vmatprep.subr.bf16.mxu0 0
    %640 = vmatpush1.bf16.msra.mxu0 0
    %641 = vmatprep.subr.bf16.mxu0 0
    %642 = vmatpush1.bf16.msra.mxu0 0
    %643 = vmatprep.subr.bf16.mxu0 0
    %644 = vmatpush1.bf16.msra.mxu0 0
    %645 = vmatprep.mubr.bf16.mxu0 0
    %646 = vmatmul.mubr.bf16.gmra.mrb[0].mxu0 %v541
    %v647 = vpop.f32.mrb[0].mxu0
    %v648 = vadd.f32 %v563, %v647
    %v649 = vpop.f32.mrb[0].mxu0
    %v650 = vpop.f32.mrb[0].mxu0
    %v651 = vadd.f32 %v563, %v650
    %v652 = vpop.f32.mrb[0].mxu0
    %653 = vdwg.mxu0
    %v654 = vmax.f32 %v648, 0.0
    %v655 = vmax.f32 %v651, 0.0
    %v656 = vpack.c.bf16 %v655, %v654
    %v657 = vld [vmem:[#allocation11] sm:$0xff]
    %v658 = vld [vmem:[#allocation11 + $0x8] sm:$0xff]
    %v659 = vld [vmem:[#allocation11 + $0x10] sm:$0xff]
    %v660 = vld [vmem:[#allocation11 + $0x18] sm:$0xff]
    %v661 = vld [vmem:[#allocation11 + $0x20] sm:$0xff]
    %v662 = vld [vmem:[#allocation11 + $0x28] sm:$0xff]
    %v663 = vld [vmem:[#allocation11 + $0x30] sm:$0xff]
    %v664 = vld [vmem:[#allocation11 + $0x38] sm:$0xff]
    %v665 = vld [vmem:[#allocation11 + $0x40] sm:$0xff]
    %v666 = vld [vmem:[#allocation11 + $0x48] sm:$0xff]
    %v667 = vld [vmem:[#allocation11 + $0x50] sm:$0xff]
    %v668 = vld [vmem:[#allocation11 + $0x58] sm:$0xff]
    %v669 = vld [vmem:[#allocation11 + $0x60] sm:$0xff]
    %v670 = vld [vmem:[#allocation11 + $0x68] sm:$0xff]
    %v671 = vld [vmem:[#allocation11 + $0x70] sm:$0xff]
    %v672 = vld [vmem:[#allocation11 + $0x78] sm:$0xff]
    %v673 = vld [vmem:[%s10] sm:$0x3]
    %v675 = vlaneseq
    %v676 = vshrl.u32 %v675, 7
    %v677 = vsub.s32 0, %v676
    %v678 = vrot.slane %v673, %v677
    %v679 = vlaneseq
    %v680 = vshrl.u32 %v679, 7
    %v681 = vsub.s32 1, %v680
    %v682 = vrot.slane %v673, %v681
    %v701 = vunpack.c.l.b16 %v657
    %v702 = vunpack.c.h.b16 %v657
    %v703 = vunpack.c.l.b16 %v658
    %v704 = vunpack.c.h.b16 %v658
    %v705 = vunpack.c.l.b16 %v659
    %v706 = vunpack.c.h.b16 %v659
    %v707 = vunpack.c.l.b16 %v660
    %v708 = vunpack.c.h.b16 %v660
    %v709 = vunpack.c.l.b16 %v661
    %v710 = vunpack.c.h.b16 %v661
    %v711 = vunpack.c.l.b16 %v662
    %v712 = vunpack.c.h.b16 %v662
    %v713 = vunpack.c.l.b16 %v663
    %v714 = vunpack.c.h.b16 %v663
    %v715 = vunpack.c.l.b16 %v664
    %v716 = vunpack.c.h.b16 %v664
    %v717 = vunpack.c.l.b16 %v665
    %v718 = vunpack.c.h.b16 %v665
    %v719 = vunpack.c.l.b16 %v666
    %v720 = vunpack.c.h.b16 %v666
    %v721 = vunpack.c.l.b16 %v667
    %v722 = vunpack.c.h.b16 %v667
    %v723 = vunpack.c.l.b16 %v668
    %v724 = vunpack.c.h.b16 %v668
    %v725 = vunpack.c.l.b16 %v669
    %v726 = vunpack.c.h.b16 %v669
    %v727 = vunpack.c.l.b16 %v670
    %v728 = vunpack.c.h.b16 %v670
    %v729 = vunpack.c.l.b16 %v671
    %v730 = vunpack.c.h.b16 %v671
    %v731 = vunpack.c.l.b16 %v672
    %v732 = vunpack.c.h.b16 %v672
    %v733 = vpack.c.b16 %v703, %v701
    %v734 = vpack.c.b16 %v704, %v702
    %v735 = vpack.c.b16 %v707, %v705
    %v736 = vpack.c.b16 %v708, %v706
    %v737 = vpack.c.b16 %v711, %v709
    %v738 = vpack.c.b16 %v712, %v710
    %v739 = vpack.c.b16 %v715, %v713
    %v740 = vpack.c.b16 %v716, %v714
    %v741 = vpack.c.b16 %v719, %v717
    %v742 = vpack.c.b16 %v720, %v718
    %v743 = vpack.c.b16 %v723, %v721
    %v744 = vpack.c.b16 %v724, %v722
    %v745 = vpack.c.b16 %v727, %v725
    %v746 = vpack.c.b16 %v728, %v726
    %v747 = vpack.c.b16 %v731, %v729
    %v748 = vpack.c.b16 %v732, %v730
    %765 = vmatprep.subr.bf16.mxu0 %v734
    %766 = vmatpush1.bf16.msra.mxu0 %v733
    %767 = vmatprep.subr.bf16.mxu0 %v736
    %768 = vmatpush1.bf16.msra.mxu0 %v735
    %769 = vmatprep.subr.bf16.mxu0 %v738
    %770 = vmatpush1.bf16.msra.mxu0 %v737
    %771 = vmatprep.subr.bf16.mxu0 %v740
    %772 = vmatpush1.bf16.msra.mxu0 %v739
    %773 = vmatprep.subr.bf16.mxu0 %v742
    %774 = vmatpush1.bf16.msra.mxu0 %v741
    %775 = vmatprep.subr.bf16.mxu0 %v744
    %776 = vmatpush1.bf16.msra.mxu0 %v743
    %777 = vmatprep.subr.bf16.mxu0 %v746
    %778 = vmatpush1.bf16.msra.mxu0 %v745
    %779 = vmatprep.subr.bf16.mxu0 %v748
    %780 = vmatpush1.bf16.msra.mxu0 %v747
    %781 = vmatprep.subr.bf16.mxu0 0
    %782 = vmatpush1.bf16.msra.mxu0 0
    %783 = vmatprep.subr.bf16.mxu0 0
    %784 = vmatpush1.bf16.msra.mxu0 0
    %785 = vmatprep.subr.bf16.mxu0 0
    %786 = vmatpush1.bf16.msra.mxu0 0
    %787 = vmatprep.subr.bf16.mxu0 0
    %788 = vmatpush1.bf16.msra.mxu0 0
    %789 = vmatprep.subr.bf16.mxu0 0
    %790 = vmatpush1.bf16.msra.mxu0 0
    %791 = vmatprep.subr.bf16.mxu0 0
    %792 = vmatpush1.bf16.msra.mxu0 0
    %793 = vmatprep.subr.bf16.mxu0 0
    %794 = vmatpush1.bf16.msra.mxu0 0
    %795 = vmatprep.subr.bf16.mxu0 0
    %796 = vmatpush1.bf16.msra.mxu0 0
    %797 = vmatprep.mubr.bf16.mxu0 0
    %798 = vmatmul.mubr.bf16.gmra.mrb[0].mxu0 %v656
    %v799 = vpop.f32.mrb[0].mxu0
    %v800 = vadd.f32 %v678, %v799
    %v801 = vpop.f32.mrb[0].mxu0
    %v802 = vadd.f32 %v682, %v801
    %v803 = vpop.f32.mrb[0].mxu0
    %v804 = vadd.f32 %v678, %v803
    %v805 = vpop.f32.mrb[0].mxu0
    %v806 = vadd.f32 %v682, %v805
    %807 = vdwg.mxu0
    %808 = vst [vmem:[#allocation13] sm:$0xff] %v800
    %809 = vst [vmem:[#allocation13 + $0x8] sm:$0xff] %v802
    %810 = vst [vmem:[#allocation13 + $0x10] sm:$0xff] %v804
    %811 = vst [vmem:[#allocation13 + $0x18] sm:$0xff] %v806
    // Predicated region
    $region70: #{tpu_custom_call.1} parent=1 // pred_check
      _
    $region71: #{tpu_custom_call.1} parent=1 // pred_check_branch
      %813 = sbr.rel (0) target = $region73
    $region72: #{tpu_custom_call.1} parent=1 // pred_region
      %s815 = ssub.s32 512, 512
      %816 = vsyncadd [#allocation4], %s815
      %s817 = sshll.u32 [#allocation13], 4
      %s818 = int_to_ptr.vmem [resolvable:$true] %s817
      %823 = dma.vmem_to_hbm [thread:$0]  %s818, 512, %s11, [#allocation4], 256, 256, 16
    $region73: #{tpu_custom_call.1} parent=1 // pred_fallthru
      _
    // Predicated region
    $region74: #{tpu_custom_call.1} parent=1 // pred_check
      _
    $region75: #{tpu_custom_call.1} parent=1 // pred_check_branch
      %825 = sbr.rel (0) target = $region77
    $region76: #{tpu_custom_call.1} parent=1 // pred_region
      %s827 = ssub.s32 256, 256
      %828 = vsyncadd [#allocation15], %s827
      %s829 = sshll.u32 [#allocation14], 4
      %s830 = int_to_ptr.vmem [resolvable:$true] %s829
      %835 = dma.vmem_to_hbm [thread:$0]  %s830, 256, %s12, [#allocation15], 128, 128, 8
    $region77: #{tpu_custom_call.1} parent=1 // pred_fallthru
      _
    // Predicated region
    $region78: #{tpu_custom_call.1} parent=1 // pred_check
      _
    $region79: #{tpu_custom_call.1} parent=1 // pred_check_branch
      %837 = sbr.rel (0) target = $region81
    $region80: #{tpu_custom_call.1} parent=1 // pred_region
      %838 = dma.done [#allocation4], 512
    $region81: #{tpu_custom_call.1} parent=1 // pred_fallthru
      _
    // Predicated region
    $region82: #{tpu_custom_call.1} parent=1 // pred_check
      _
    $region83: #{tpu_custom_call.1} parent=1 // pred_check_branch
      %840 = sbr.rel (0) target = $region85
    $region84: #{tpu_custom_call.1} parent=1 // pred_region
      %841 = dma.done [#allocation15], 256
    $region85: #{tpu_custom_call.1} parent=1 // pred_fallthru
      _
    %842 = vsyncpa [#allocation3], 1
    %843 = vsyncpa [#allocation6], 1
    %844 = vsyncpa [#allocation9], 1
    %845 = vsyncpa [#allocation12], 1
    %846 = vsyncpa [#allocation4], 1
    %847 = vsyncpa [#allocation15], 1

// kernel: tpu_custom_call.1
$region0: #{tpu_custom_call.1}
  #allocation0 [shape = 'u32[]', space=smem, size = 0x4, offset = 0x4, fixed_abs, tag = 'smem constant byte address 0x4 - core index']
  #allocation1 [shape = 'u32[144,128]{1,0:T(1,128)}', space=vmem, size = 0x12000, scoped, tag = 'internal scratch']
  %s0 = inlined_call_operand.hbm [shape: f32[16,256], index: 0, kind: input, shape index: {}]
  %s1 = inlined_call_operand.hbm [shape: bf16[256,128], index: 1, kind: input, shape index: {}]
  %s2 = inlined_call_operand.vmem [shape: f32[1,128], index: 2, kind: input, shape index: {}]
  %s3 = inlined_call_operand.hbm [shape: bf16[128,128], index: 3, kind: input, shape index: {}]
  %s4 = inlined_call_operand.vmem [shape: f32[1,128], index: 4, kind: input, shape index: {}]
  %s5 = inlined_call_operand.hbm [shape: bf16[128,128], index: 5, kind: input, shape index: {}]
  %s6 = inlined_call_operand.vmem [shape: f32[1,128], index: 6, kind: input, shape index: {}]
  %s7 = inlined_call_operand.hbm [shape: bf16[128,128], index: 7, kind: input, shape index: {}]
  %s8 = inlined_call_operand.vmem [shape: f32[1,128], index: 8, kind: input, shape index: {}]
  %s9 = inlined_call_operand.hbm [shape: bf16[128,256], index: 9, kind: input, shape index: {}]
  %s10 = inlined_call_operand.vmem [shape: f32[1,256], index: 10, kind: input, shape index: {}]
  %s11 = inlined_call_operand.hbm [shape: f32[16,256], index: 11, kind: output, shape index: {0}]
  %s12 = inlined_call_operand.hbm [shape: f32[16,128], index: 12, kind: output, shape index: {1}]
  %13 = xla_tuple %s11, %s12
  %s14 = sld [smem:[#allocation0]]
  $region86: #{tpu_custom_call.1} parent=0
    _
  %s16 = ssub.s32 1, %s14
  %s17 = scalar_select 0, %s16, %s14
  $region1: #{tpu_custom_call.1} parent=0
    #allocation2 [shape = 'u8[16384]{0}', space=vmem, size = 0x4000, scoped, tag = 'input window, operand 0, single buffered']
    #allocation3 [shape = 's32[1]{0}', space=sflag, size = 0x4, scoped, tag = 'scoped memory for tpu_custom_call.1']
    #allocation4 [shape = 's32[1]{0}', space=sflag, size = 0x4, scoped, tag = 'scoped memory for tpu_custom_call.1']
    #allocation5 [shape = 'u8[65536]{0}', space=vmem, size = 0x10000, scoped, tag = 'input window, operand 1, single buffered']
    #allocation6 [shape = 's32[1]{0}', space=sflag, size = 0x4, scoped, tag = 'scoped memory for tpu_custom_call.1']
    #allocation7 [shape = 'u8[32768]{0}', space=vmem, size = 0x8000, scoped, tag = 'input window, operand 3, single buffered']
    #allocation8 [shape = 'u8[32768]{0}', space=vmem, size = 0x8000, scoped, tag = 'input window, operand 5, single buffered']
    #allocation9 [shape = 's32[1]{0}', space=sflag, size = 0x4, scoped, tag = 'scoped memory for tpu_custom_call.1']
    #allocation10 [shape = 'u8[32768]{0}', space=vmem, size = 0x8000, scoped, tag = 'input window, operand 7, single buffered']
    #allocation11 [shape = 'u8[65536]{0}', space=vmem, size = 0x10000, scoped, tag = 'input window, operand 9, single buffered']
    #allocation12 [shape = 's32[1]{0}', space=sflag, size = 0x4, scoped, tag = 'scoped memory for tpu_custom_call.1']
    #allocation13 [shape = 'u8[16384]{0}', space=vmem, size = 0x4000, scoped, tag = 'output window, operand 0, single buffered']
    #allocation14 [shape = 'u8[8192]{0}', space=vmem, size = 0x2000, scoped, tag = 'output window, operand 1, single buffered']
    #allocation15 [shape = 's32[1]{0}', space=sflag, size = 0x4, scoped, tag = 'scoped memory for tpu_custom_call.1']
    %18 = vsyncpa [#allocation3], 0
    %19 = vsyncpa [#allocation6], 0
    %20 = vsyncpa [#allocation9], 0
    %21 = vsyncpa [#allocation12], 0
    %22 = vsyncpa [#allocation4], 0
    %23 = vsyncpa [#allocation15], 0
    // Predicated region
    $region2: #{tpu_custom_call.1} parent=1 // pred_check
      _
    $region3: #{tpu_custom_call.1} parent=1 // pred_check_branch
      %25 = sbr.rel (0) target = $region5
    $region4: #{tpu_custom_call.1} parent=1 // pred_region
      %s27 = ssub.s32 512, 512
      %28 = vsyncadd [#allocation3], %s27
      %s29 = sshll.u32 [#allocation2], 4
      %s30 = int_to_ptr.vmem [resolvable:$true] %s29
      %35 = dma.hbm_to_vmem [thread:$0]  %s0, 512, %s30, [#allocation3], 256, 256, 16
    $region5: #{tpu_custom_call.1} parent=1 // pred_fallthru
      _
    // Predicated region
    $region6: #{tpu_custom_call.1} parent=1 // pred_check
      _
    $region7: #{tpu_custom_call.1} parent=1 // pred_check_branch
      %37 = sbr.rel (0) target = $region9
    $region8: #{tpu_custom_call.1} parent=1 // pred_region
      %s39 = ssub.s32 2048, 2048
      %40 = vsyncadd [#allocation6], %s39
      %s41 = sshll.u32 [#allocation5], 4
      %s42 = int_to_ptr.vmem [resolvable:$true] %s41
      %47 = dma.hbm_to_vmem [thread:$0]  %s1, 2048, %s42, [#allocation6], 64, 64, 4
    $region9: #{tpu_custom_call.1} parent=1 // pred_fallthru
      _
    // Predicated region
    $region10: #{tpu_custom_call.1} parent=1 // pred_check
      _
    $region11: #{tpu_custom_call.1} parent=1 // pred_check_branch
      %49 = sbr.rel (0) target = $region13
    $region12: #{tpu_custom_call.1} parent=1 // pred_region
      _
    $region13: #{tpu_custom_call.1} parent=1 // pred_fallthru
      _
    // Predicated region
    $region14: #{tpu_custom_call.1} parent=1 // pred_check
      _
    $region15: #{tpu_custom_call.1} parent=1 // pred_check_branch
      %51 = sbr.rel (0) target = $region17
    $region16: #{tpu_custom_call.1} parent=1 // pred_region
      %s53 = ssub.s32 1024, 1024
      %54 = vsyncadd [#allocation6], %s53
      %s55 = sshll.u32 [#allocation7], 4
      %s56 = int_to_ptr.vmem [resolvable:$true] %s55
      %61 = dma.hbm_to_vmem [thread:$0]  %s3, 1024, %s56, [#allocation6], 64, 64, 4
    $region17: #{tpu_custom_call.1} parent=1 // pred_fallthru
      _
    // Predicated region
    $region18: #{tpu_custom_call.1} parent=1 // pred_check
      _
    $region19: #{tpu_custom_call.1} parent=1 // pred_check_branch
      %63 = sbr.rel (0) target = $region21
    $region20: #{tpu_custom_call.1} parent=1 // pred_region
      _
    $region21: #{tpu_custom_call.1} parent=1 // pred_fallthru
      _
    // Predicated region
    $region22: #{tpu_custom_call.1} parent=1 // pred_check
      _
    $region23: #{tpu_custom_call.1} parent=1 // pred_check_branch
      %65 = sbr.rel (0) target = $region25
    $region24: #{tpu_custom_call.1} parent=1 // pred_region
      %s67 = ssub.s32 1024, 1024
      %68 = vsyncadd [#allocation9], %s67
      %s69 = sshll.u32 [#allocation8], 4
      %s70 = int_to_ptr.vmem [resolvable:$true] %s69
      %75 = dma.hbm_to_vmem [thread:$0]  %s5, 1024, %s70, [#allocation9], 64, 64, 4
    $region25: #{tpu_custom_call.1} parent=1 // pred_fallthru
      _
    // Predicated region
    $region26: #{tpu_custom_call.1} parent=1 // pred_check
      _
    $region27: #{tpu_custom_call.1} parent=1 // pred_check_branch
      %77 = sbr.rel (0) target = $region29
    $region28: #{tpu_custom_call.1} parent=1 // pred_region
      _
    $region29: #{tpu_custom_call.1} parent=1 // pred_fallthru
      _
    // Predicated region
    $region30: #{tpu_custom_call.1} parent=1 // pred_check
      _
    $region31: #{tpu_custom_call.1} parent=1 // pred_check_branch
      %79 = sbr.rel (0) target = $region33
    $region32: #{tpu_custom_call.1} parent=1 // pred_region
      %s81 = ssub.s32 1024, 1024
      %82 = vsyncadd [#allocation9], %s81
      %s83 = sshll.u32 [#allocation10], 4
      %s84 = int_to_ptr.vmem [resolvable:$true] %s83
      %89 = dma.hbm_to_vmem [thread:$0]  %s7, 1024, %s84, [#allocation9], 64, 64, 4
    $region33: #{tpu_custom_call.1} parent=1 // pred_fallthru
      _
    // Predicated region
    $region34: #{tpu_custom_call.1} parent=1 // pred_check
      _
    $region35: #{tpu_custom_call.1} parent=1 // pred_check_branch
      %91 = sbr.rel (0) target = $region37
    $region36: #{tpu_custom_call.1} parent=1 // pred_region
      _
    $region37: #{tpu_custom_call.1} parent=1 // pred_fallthru
      _
    // Predicated region
    $region38: #{tpu_custom_call.1} parent=1 // pred_check
      _
    $region39: #{tpu_custom_call.1} parent=1 // pred_check_branch
      %93 = sbr.rel (0) target = $region41
    $region40: #{tpu_custom_call.1} parent=1 // pred_region
      %s95 = ssub.s32 2048, 2048
      %96 = vsyncadd [#allocation12], %s95
      %s97 = sshll.u32 [#allocation11], 4
      %s98 = int_to_ptr.vmem [resolvable:$true] %s97
      %103 = dma.hbm_to_vmem [thread:$0]  %s9, 2048, %s98, [#allocation12], 128, 128, 8
    $region41: #{tpu_custom_call.1} parent=1 // pred_fallthru
      _
    // Predicated region
    $region42: #{tpu_custom_call.1} parent=1 // pred_check
      _
    $region43: #{tpu_custom_call.1} parent=1 // pred_check_branch
      %105 = sbr.rel (0) target = $region45
    $region44: #{tpu_custom_call.1} parent=1 // pred_region
      _
    $region45: #{tpu_custom_call.1} parent=1 // pred_fallthru
      _
    // Predicated region
    $region46: #{tpu_custom_call.1} parent=1 // pred_check
      _
    $region47: #{tpu_custom_call.1} parent=1 // pred_check_branch
      %107 = sbr.rel (0) target = $region49
    $region48: #{tpu_custom_call.1} parent=1 // pred_region
      %108 = dma.done [#allocation3], 512
    $region49: #{tpu_custom_call.1} parent=1 // pred_fallthru
      _
    // Predicated region
    $region50: #{tpu_custom_call.1} parent=1 // pred_check
      _
    $region51: #{tpu_custom_call.1} parent=1 // pred_check_branch
      %110 = sbr.rel (0) target = $region53
    $region52: #{tpu_custom_call.1} parent=1 // pred_region
      %111 = dma.done [#allocation6], 2048
    $region53: #{tpu_custom_call.1} parent=1 // pred_fallthru
      _
    // Predicated region
    $region54: #{tpu_custom_call.1} parent=1 // pred_check
      _
    $region55: #{tpu_custom_call.1} parent=1 // pred_check_branch
      %113 = sbr.rel (0) target = $region57
    $region56: #{tpu_custom_call.1} parent=1 // pred_region
      %114 = dma.done [#allocation6], 1024
    $region57: #{tpu_custom_call.1} parent=1 // pred_fallthru
      _
    // Predicated region
    $region58: #{tpu_custom_call.1} parent=1 // pred_check
      _
    $region59: #{tpu_custom_call.1} parent=1 // pred_check_branch
      %116 = sbr.rel (0) target = $region61
    $region60: #{tpu_custom_call.1} parent=1 // pred_region
      %117 = dma.done [#allocation9], 1024
    $region61: #{tpu_custom_call.1} parent=1 // pred_fallthru
      _
    // Predicated region
    $region62: #{tpu_custom_call.1} parent=1 // pred_check
      _
    $region63: #{tpu_custom_call.1} parent=1 // pred_check_branch
      %119 = sbr.rel (0) target = $region65
    $region64: #{tpu_custom_call.1} parent=1 // pred_region
      %120 = dma.done [#allocation9], 1024
    $region65: #{tpu_custom_call.1} parent=1 // pred_fallthru
      _
    // Predicated region
    $region66: #{tpu_custom_call.1} parent=1 // pred_check
      _
    $region67: #{tpu_custom_call.1} parent=1 // pred_check_branch
      %122 = sbr.rel (0) target = $region69
    $region68: #{tpu_custom_call.1} parent=1 // pred_region
      %123 = dma.done [#allocation12], 2048
    $region69: #{tpu_custom_call.1} parent=1 // pred_fallthru
      _
    %v125 = vld [vmem:[#allocation2] sm:$0xff]
    %v126 = vld [vmem:[#allocation2 + $0x8] sm:$0xff]
    %v127 = vld [vmem:[#allocation2 + $0x10] sm:$0xff]
    %v128 = vld [vmem:[#allocation2 + $0x18] sm:$0xff]
    %v129 = vpack.c.bf16 %v127, %v125
    %v130 = vpack.c.bf16 %v128, %v126
    %v131 = vld [vmem:[#allocation5] sm:$0xf]
    %v132 = vld [vmem:[#allocation5 + $0x4] sm:$0xf]
    %v133 = vld [vmem:[#allocation5 + $0x8] sm:$0xf]
    %v134 = vld [vmem:[#allocation5 + $0xc] sm:$0xf]
    %v135 = vld [vmem:[#allocation5 + $0x10] sm:$0xf]
    %v136 = vld [vmem:[#allocation5 + $0x14] sm:$0xf]
    %v137 = vld [vmem:[#allocation5 + $0x18] sm:$0xf]
    %v138 = vld [vmem:[#allocation5 + $0x1c] sm:$0xf]
    %v139 = vld [vmem:[#allocation5 + $0x20] sm:$0xf]
    %v140 = vld [vmem:[#allocation5 + $0x24] sm:$0xf]
    %v141 = vld [vmem:[#allocation5 + $0x28] sm:$0xf]
    %v142 = vld [vmem:[#allocation5 + $0x2c] sm:$0xf]
    %v143 = vld [vmem:[#allocation5 + $0x30] sm:$0xf]
    %v144 = vld [vmem:[#allocation5 + $0x34] sm:$0xf]
    %v145 = vld [vmem:[#allocation5 + $0x38] sm:$0xf]
    %v146 = vld [vmem:[#allocation5 + $0x3c] sm:$0xf]
    %v147 = vld [vmem:[#allocation5 + $0x40] sm:$0xf]
    %v148 = vld [vmem:[#allocation5 + $0x44] sm:$0xf]
    %v149 = vld [vmem:[#allocation5 + $0x48] sm:$0xf]
    %v150 = vld [vmem:[#allocation5 + $0x4c] sm:$0xf]
    %v151 = vld [vmem:[#allocation5 + $0x50] sm:$0xf]
    %v152 = vld [vmem:[#allocation5 + $0x54] sm:$0xf]
    %v153 = vld [vmem:[#allocation5 + $0x58] sm:$0xf]
    %v154 = vld [vmem:[#allocation5 + $0x5c] sm:$0xf]
    %v155 = vld [vmem:[#allocation5 + $0x60] sm:$0xf]
    %v156 = vld [vmem:[#allocation5 + $0x64] sm:$0xf]
    %v157 = vld [vmem:[#allocation5 + $0x68] sm:$0xf]
    %v158 = vld [vmem:[#allocation5 + $0x6c] sm:$0xf]
    %v159 = vld [vmem:[#allocation5 + $0x70] sm:$0xf]
    %v160 = vld [vmem:[#allocation5 + $0x74] sm:$0xf]
    %v161 = vld [vmem:[#allocation5 + $0x78] sm:$0xf]
    %v162 = vld [vmem:[#allocation5 + $0x7c] sm:$0xf]
    %v163 = vld [vmem:[%s2] sm:$0x1]
    %v165 = vlaneseq
    %v166 = vshrl.u32 %v165, 7
    %v167 = vsub.s32 0, %v166
    %v168 = vrot.slane %v163, %v167
    %v202 = vunpack.c.l.b16 %v131
    %v203 = vunpack.c.l.b16 %v132
    %v204 = vunpack.c.l.b16 %v133
    %v205 = vunpack.c.l.b16 %v134
    %v206 = vunpack.c.l.b16 %v135
    %v207 = vunpack.c.l.b16 %v136
    %v208 = vunpack.c.l.b16 %v137
    %v209 = vunpack.c.l.b16 %v138
    %v210 = vunpack.c.l.b16 %v139
    %v211 = vunpack.c.l.b16 %v140
    %v212 = vunpack.c.l.b16 %v141
    %v213 = vunpack.c.l.b16 %v142
    %v214 = vunpack.c.l.b16 %v143
    %v215 = vunpack.c.l.b16 %v144
    %v216 = vunpack.c.l.b16 %v145
    %v217 = vunpack.c.l.b16 %v146
    %v218 = vunpack.c.l.b16 %v147
    %v219 = vunpack.c.l.b16 %v148
    %v220 = vunpack.c.l.b16 %v149
    %v221 = vunpack.c.l.b16 %v150
    %v222 = vunpack.c.l.b16 %v151
    %v223 = vunpack.c.l.b16 %v152
    %v224 = vunpack.c.l.b16 %v153
    %v225 = vunpack.c.l.b16 %v154
    %v226 = vunpack.c.l.b16 %v155
    %v227 = vunpack.c.l.b16 %v156
    %v228 = vunpack.c.l.b16 %v157
    %v229 = vunpack.c.l.b16 %v158
    %v230 = vunpack.c.l.b16 %v159
    %v231 = vunpack.c.l.b16 %v160
    %v232 = vunpack.c.l.b16 %v161
    %v233 = vunpack.c.l.b16 %v162
    %v234 = vpack.c.b16 %v203, %v202
    %v235 = vpack.c.b16 %v205, %v204
    %v236 = vpack.c.b16 %v207, %v206
    %v237 = vpack.c.b16 %v209, %v208
    %v238 = vpack.c.b16 %v211, %v210
    %v239 = vpack.c.b16 %v213, %v212
    %v240 = vpack.c.b16 %v215, %v214
    %v241 = vpack.c.b16 %v217, %v216
    %v242 = vpack.c.b16 %v219, %v218
    %v243 = vpack.c.b16 %v221, %v220
    %v244 = vpack.c.b16 %v223, %v222
    %v245 = vpack.c.b16 %v225, %v224
    %v246 = vpack.c.b16 %v227, %v226
    %v247 = vpack.c.b16 %v229, %v228
    %v248 = vpack.c.b16 %v231, %v230
    %v249 = vpack.c.b16 %v233, %v232
    %266 = vmatprep.subr.bf16.mxu0 0
    %267 = vmatpush1.bf16.msra.mxu0 %v234
    %268 = vmatprep.subr.bf16.mxu0 0
    %269 = vmatpush1.bf16.msra.mxu0 %v235
    %270 = vmatprep.subr.bf16.mxu0 0
    %271 = vmatpush1.bf16.msra.mxu0 %v236
    %272 = vmatprep.subr.bf16.mxu0 0
    %273 = vmatpush1.bf16.msra.mxu0 %v237
    %274 = vmatprep.subr.bf16.mxu0 0
    %275 = vmatpush1.bf16.msra.mxu0 %v238
    %276 = vmatprep.subr.bf16.mxu0 0
    %277 = vmatpush1.bf16.msra.mxu0 %v239
    %278 = vmatprep.subr.bf16.mxu0 0
    %279 = vmatpush1.bf16.msra.mxu0 %v240
    %280 = vmatprep.subr.bf16.mxu0 0
    %281 = vmatpush1.bf16.msra.mxu0 %v241
    %282 = vmatprep.subr.bf16.mxu0 0
    %283 = vmatpush1.bf16.msra.mxu0 %v242
    %284 = vmatprep.subr.bf16.mxu0 0
    %285 = vmatpush1.bf16.msra.mxu0 %v243
    %286 = vmatprep.subr.bf16.mxu0 0
    %287 = vmatpush1.bf16.msra.mxu0 %v244
    %288 = vmatprep.subr.bf16.mxu0 0
    %289 = vmatpush1.bf16.msra.mxu0 %v245
    %290 = vmatprep.subr.bf16.mxu0 0
    %291 = vmatpush1.bf16.msra.mxu0 %v246
    %292 = vmatprep.subr.bf16.mxu0 0
    %293 = vmatpush1.bf16.msra.mxu0 %v247
    %294 = vmatprep.subr.bf16.mxu0 0
    %295 = vmatpush1.bf16.msra.mxu0 %v248
    %296 = vmatprep.subr.bf16.mxu0 0
    %297 = vmatpush1.bf16.msra.mxu0 %v249
    %298 = vmatprep.mubr.bf16.mxu0 %v130
    %299 = vmatmul.mubr.bf16.gmra.mrb[0].mxu0 %v129
    %v300 = vpop.f32.mrb[0].mxu0
    %v301 = vadd.f32 %v168, %v300
    %v302 = vpop.f32.mrb[0].mxu0
    %v303 = vpop.f32.mrb[0].mxu0
    %v304 = vadd.f32 %v168, %v303
    %v305 = vpop.f32.mrb[0].mxu0
    %306 = vdwg.mxu0
    %v307 = vmax.f32 %v301, 0.0
    %v308 = vmax.f32 %v304, 0.0
    %v309 = vpack.c.bf16 %v308, %v307
    %v310 = vld [vmem:[#allocation7] sm:$0xf]
    %v311 = vld [vmem:[#allocation7 + $0x4] sm:$0xf]
    %v312 = vld [vmem:[#allocation7 + $0x8] sm:$0xf]
    %v313 = vld [vmem:[#allocation7 + $0xc] sm:$0xf]
    %v314 = vld [vmem:[#allocation7 + $0x10] sm:$0xf]
    %v315 = vld [vmem:[#allocation7 + $0x14] sm:$0xf]
    %v316 = vld [vmem:[#allocation7 + $0x18] sm:$0xf]
    %v317 = vld [vmem:[#allocation7 + $0x1c] sm:$0xf]
    %v318 = vld [vmem:[#allocation7 + $0x20] sm:$0xf]
    %v319 = vld [vmem:[#allocation7 + $0x24] sm:$0xf]
    %v320 = vld [vmem:[#allocation7 + $0x28] sm:$0xf]
    %v321 = vld [vmem:[#allocation7 + $0x2c] sm:$0xf]
    %v322 = vld [vmem:[#allocation7 + $0x30] sm:$0xf]
    %v323 = vld [vmem:[#allocation7 + $0x34] sm:$0xf]
    %v324 = vld [vmem:[#allocation7 + $0x38] sm:$0xf]
    %v325 = vld [vmem:[#allocation7 + $0x3c] sm:$0xf]
    %v326 = vld [vmem:[%s4] sm:$0x1]
    %v328 = vlaneseq
    %v329 = vshrl.u32 %v328, 7
    %v330 = vsub.s32 0, %v329
    %v331 = vrot.slane %v326, %v330
    %v349 = vunpack.c.l.b16 %v310
    %v350 = vunpack.c.l.b16 %v311
    %v351 = vunpack.c.l.b16 %v312
    %v352 = vunpack.c.l.b16 %v313
    %v353 = vunpack.c.l.b16 %v314
    %v354 = vunpack.c.l.b16 %v315
    %v355 = vunpack.c.l.b16 %v316
    %v356 = vunpack.c.l.b16 %v317
    %v357 = vunpack.c.l.b16 %v318
    %v358 = vunpack.c.l.b16 %v319
    %v359 = vunpack.c.l.b16 %v320
    %v360 = vunpack.c.l.b16 %v321
    %v361 = vunpack.c.l.b16 %v322
    %v362 = vunpack.c.l.b16 %v323
    %v363 = vunpack.c.l.b16 %v324
    %v364 = vunpack.c.l.b16 %v325
    %v365 = vpack.c.b16 %v350, %v349
    %v366 = vpack.c.b16 %v352, %v351
    %v367 = vpack.c.b16 %v354, %v353
    %v368 = vpack.c.b16 %v356, %v355
    %v369 = vpack.c.b16 %v358, %v357
    %v370 = vpack.c.b16 %v360, %v359
    %v371 = vpack.c.b16 %v362, %v361
    %v372 = vpack.c.b16 %v364, %v363
    %381 = vmatprep.subr.bf16.mxu0 0
    %382 = vmatpush1.bf16.msra.mxu0 %v365
    %383 = vmatprep.subr.bf16.mxu0 0
    %384 = vmatpush1.bf16.msra.mxu0 %v366
    %385 = vmatprep.subr.bf16.mxu0 0
    %386 = vmatpush1.bf16.msra.mxu0 %v367
    %387 = vmatprep.subr.bf16.mxu0 0
    %388 = vmatpush1.bf16.msra.mxu0 %v368
    %389 = vmatprep.subr.bf16.mxu0 0
    %390 = vmatpush1.bf16.msra.mxu0 %v369
    %391 = vmatprep.subr.bf16.mxu0 0
    %392 = vmatpush1.bf16.msra.mxu0 %v370
    %393 = vmatprep.subr.bf16.mxu0 0
    %394 = vmatpush1.bf16.msra.mxu0 %v371
    %395 = vmatprep.subr.bf16.mxu0 0
    %396 = vmatpush1.bf16.msra.mxu0 %v372
    %397 = vmatprep.subr.bf16.mxu0 0
    %398 = vmatpush1.bf16.msra.mxu0 0
    %399 = vmatprep.subr.bf16.mxu0 0
    %400 = vmatpush1.bf16.msra.mxu0 0
    %401 = vmatprep.subr.bf16.mxu0 0
    %402 = vmatpush1.bf16.msra.mxu0 0
    %403 = vmatprep.subr.bf16.mxu0 0
    %404 = vmatpush1.bf16.msra.mxu0 0
    %405 = vmatprep.subr.bf16.mxu0 0
    %406 = vmatpush1.bf16.msra.mxu0 0
    %407 = vmatprep.subr.bf16.mxu0 0
    %408 = vmatpush1.bf16.msra.mxu0 0
    %409 = vmatprep.subr.bf16.mxu0 0
    %410 = vmatpush1.bf16.msra.mxu0 0
    %411 = vmatprep.subr.bf16.mxu0 0
    %412 = vmatpush1.bf16.msra.mxu0 0
    %413 = vmatprep.mubr.bf16.mxu0 0
    %414 = vmatmul.mubr.bf16.gmra.mrb[0].mxu0 %v309
    %v415 = vpop.f32.mrb[0].mxu0
    %v416 = vadd.f32 %v331, %v415
    %v417 = vpop.f32.mrb[0].mxu0
    %v418 = vpop.f32.mrb[0].mxu0
    %v419 = vadd.f32 %v331, %v418
    %v420 = vpop.f32.mrb[0].mxu0
    %421 = vdwg.mxu0
    %v422 = vmax.f32 %v416, 0.0
    %v423 = vmax.f32 %v419, 0.0
    %424 = vst [vmem:[#allocation14] sm:$0xff] %v422
    %425 = vst [vmem:[#allocation14 + $0x8] sm:$0xff] %v423
    %v426 = vpack.c.bf16 %v423, %v422
    %v427 = vld [vmem:[#allocation8] sm:$0xf]
    %v428 = vld [vmem:[#allocation8 + $0x4] sm:$0xf]
    %v429 = vld [vmem:[#allocation8 + $0x8] sm:$0xf]
    %v430 = vld [vmem:[#allocation8 + $0xc] sm:$0xf]
    %v431 = vld [vmem:[#allocation8 + $0x10] sm:$0xf]
    %v432 = vld [vmem:[#allocation8 + $0x14] sm:$0xf]
    %v433 = vld [vmem:[#allocation8 + $0x18] sm:$0xf]
    %v434 = vld [vmem:[#allocation8 + $0x1c] sm:$0xf]
    %v435 = vld [vmem:[#allocation8 + $0x20] sm:$0xf]
    %v436 = vld [vmem:[#allocation8 + $0x24] sm:$0xf]
    %v437 = vld [vmem:[#allocation8 + $0x28] sm:$0xf]
    %v438 = vld [vmem:[#allocation8 + $0x2c] sm:$0xf]
    %v439 = vld [vmem:[#allocation8 + $0x30] sm:$0xf]
    %v440 = vld [vmem:[#allocation8 + $0x34] sm:$0xf]
    %v441 = vld [vmem:[#allocation8 + $0x38] sm:$0xf]
    %v442 = vld [vmem:[#allocation8 + $0x3c] sm:$0xf]
    %v443 = vld [vmem:[%s6] sm:$0x1]
    %v445 = vlaneseq
    %v446 = vshrl.u32 %v445, 7
    %v447 = vsub.s32 0, %v446
    %v448 = vrot.slane %v443, %v447
    %v466 = vunpack.c.l.b16 %v427
    %v467 = vunpack.c.l.b16 %v428
    %v468 = vunpack.c.l.b16 %v429
    %v469 = vunpack.c.l.b16 %v430
    %v470 = vunpack.c.l.b16 %v431
    %v471 = vunpack.c.l.b16 %v432
    %v472 = vunpack.c.l.b16 %v433
    %v473 = vunpack.c.l.b16 %v434
    %v474 = vunpack.c.l.b16 %v435
    %v475 = vunpack.c.l.b16 %v436
    %v476 = vunpack.c.l.b16 %v437
    %v477 = vunpack.c.l.b16 %v438
    %v478 = vunpack.c.l.b16 %v439
    %v479 = vunpack.c.l.b16 %v440
    %v480 = vunpack.c.l.b16 %v441
    %v481 = vunpack.c.l.b16 %v442
    %v482 = vpack.c.b16 %v467, %v466
    %v483 = vpack.c.b16 %v469, %v468
    %v484 = vpack.c.b16 %v471, %v470
    %v485 = vpack.c.b16 %v473, %v472
    %v486 = vpack.c.b16 %v475, %v474
    %v487 = vpack.c.b16 %v477, %v476
    %v488 = vpack.c.b16 %v479, %v478
    %v489 = vpack.c.b16 %v481, %v480
    %498 = vmatprep.subr.bf16.mxu0 0
    %499 = vmatpush1.bf16.msra.mxu0 %v482
    %500 = vmatprep.subr.bf16.mxu0 0
    %501 = vmatpush1.bf16.msra.mxu0 %v483
    %502 = vmatprep.subr.bf16.mxu0 0
    %503 = vmatpush1.bf16.msra.mxu0 %v484
    %504 = vmatprep.subr.bf16.mxu0 0
    %505 = vmatpush1.bf16.msra.mxu0 %v485
    %506 = vmatprep.subr.bf16.mxu0 0
    %507 = vmatpush1.bf16.msra.mxu0 %v486
    %508 = vmatprep.subr.bf16.mxu0 0
    %509 = vmatpush1.bf16.msra.mxu0 %v487
    %510 = vmatprep.subr.bf16.mxu0 0
    %511 = vmatpush1.bf16.msra.mxu0 %v488
    %512 = vmatprep.subr.bf16.mxu0 0
    %513 = vmatpush1.bf16.msra.mxu0 %v489
    %514 = vmatprep.subr.bf16.mxu0 0
    %515 = vmatpush1.bf16.msra.mxu0 0
    %516 = vmatprep.subr.bf16.mxu0 0
    %517 = vmatpush1.bf16.msra.mxu0 0
    %518 = vmatprep.subr.bf16.mxu0 0
    %519 = vmatpush1.bf16.msra.mxu0 0
    %520 = vmatprep.subr.bf16.mxu0 0
    %521 = vmatpush1.bf16.msra.mxu0 0
    %522 = vmatprep.subr.bf16.mxu0 0
    %523 = vmatpush1.bf16.msra.mxu0 0
    %524 = vmatprep.subr.bf16.mxu0 0
    %525 = vmatpush1.bf16.msra.mxu0 0
    %526 = vmatprep.subr.bf16.mxu0 0
    %527 = vmatpush1.bf16.msra.mxu0 0
    %528 = vmatprep.subr.bf16.mxu0 0
    %529 = vmatpush1.bf16.msra.mxu0 0
    %530 = vmatprep.mubr.bf16.mxu0 0
    %531 = vmatmul.mubr.bf16.gmra.mrb[0].mxu0 %v426
    %v532 = vpop.f32.mrb[0].mxu0
    %v533 = vadd.f32 %v448, %v532
    %v534 = vpop.f32.mrb[0].mxu0
    %v535 = vpop.f32.mrb[0].mxu0
    %v536 = vadd.f32 %v448, %v535
    %v537 = vpop.f32.mrb[0].mxu0
    %538 = vdwg.mxu0
    %v539 = vmax.f32 %v533, 0.0
    %v540 = vmax.f32 %v536, 0.0
    %v541 = vpack.c.bf16 %v540, %v539
    %v542 = vld [vmem:[#allocation10] sm:$0xf]
    %v543 = vld [vmem:[#allocation10 + $0x4] sm:$0xf]
    %v544 = vld [vmem:[#allocation10 + $0x8] sm:$0xf]
    %v545 = vld [vmem:[#allocation10 + $0xc] sm:$0xf]
    %v546 = vld [vmem:[#allocation10 + $0x10] sm:$0xf]
    %v547 = vld [vmem:[#allocation10 + $0x14] sm:$0xf]
    %v548 = vld [vmem:[#allocation10 + $0x18] sm:$0xf]
    %v549 = vld [vmem:[#allocation10 + $0x1c] sm:$0xf]
    %v550 = vld [vmem:[#allocation10 + $0x20] sm:$0xf]
    %v551 = vld [vmem:[#allocation10 + $0x24] sm:$0xf]
    %v552 = vld [vmem:[#allocation10 + $0x28] sm:$0xf]
    %v553 = vld [vmem:[#allocation10 + $0x2c] sm:$0xf]
    %v554 = vld [vmem:[#allocation10 + $0x30] sm:$0xf]
    %v555 = vld [vmem:[#allocation10 + $0x34] sm:$0xf]
    %v556 = vld [vmem:[#allocation10 + $0x38] sm:$0xf]
    %v557 = vld [vmem:[#allocation10 + $0x3c] sm:$0xf]
    %v558 = vld [vmem:[%s8] sm:$0x1]
    %v560 = vlaneseq
    %v561 = vshrl.u32 %v560, 7
    %v562 = vsub.s32 0, %v561
    %v563 = vrot.slane %v558, %v562
    %v581 = vunpack.c.l.b16 %v542
    %v582 = vunpack.c.l.b16 %v543
    %v583 = vunpack.c.l.b16 %v544
    %v584 = vunpack.c.l.b16 %v545
    %v585 = vunpack.c.l.b16 %v546
    %v586 = vunpack.c.l.b16 %v547
    %v587 = vunpack.c.l.b16 %v548
    %v588 = vunpack.c.l.b16 %v549
    %v589 = vunpack.c.l.b16 %v550
    %v590 = vunpack.c.l.b16 %v551
    %v591 = vunpack.c.l.b16 %v552
    %v592 = vunpack.c.l.b16 %v553
    %v593 = vunpack.c.l.b16 %v554
    %v594 = vunpack.c.l.b16 %v555
    %v595 = vunpack.c.l.b16 %v556
    %v596 = vunpack.c.l.b16 %v557
    %v597 = vpack.c.b16 %v582, %v581
    %v598 = vpack.c.b16 %v584, %v583
    %v599 = vpack.c.b16 %v586, %v585
    %v600 = vpack.c.b16 %v588, %v587
    %v601 = vpack.c.b16 %v590, %v589
    %v602 = vpack.c.b16 %v592, %v591
    %v603 = vpack.c.b16 %v594, %v593
    %v604 = vpack.c.b16 %v596, %v595
    %613 = vmatprep.subr.bf16.mxu0 0
    %614 = vmatpush1.bf16.msra.mxu0 %v597
    %615 = vmatprep.subr.bf16.mxu0 0
    %616 = vmatpush1.bf16.msra.mxu0 %v598
    %617 = vmatprep.subr.bf16.mxu0 0
    %618 = vmatpush1.bf16.msra.mxu0 %v599
    %619 = vmatprep.subr.bf16.mxu0 0
    %620 = vmatpush1.bf16.msra.mxu0 %v600
    %621 = vmatprep.subr.bf16.mxu0 0
    %622 = vmatpush1.bf16.msra.mxu0 %v601
    %623 = vmatprep.subr.bf16.mxu0 0
    %624 = vmatpush1.bf16.msra.mxu0 %v602
    %625 = vmatprep.subr.bf16.mxu0 0
    %626 = vmatpush1.bf16.msra.mxu0 %v603
    %627 = vmatprep.subr.bf16.mxu0 0
    %628 = vmatpush1.bf16.msra.mxu0 %v604
    %629 = vmatprep.subr.bf16.mxu0 0
    %630 = vmatpush1.bf16.msra.mxu0 0
    %631 = vmatprep.subr.bf16.mxu0 0
    %632 = vmatpush1.bf16.msra.mxu0 0
    %633 = vmatprep.subr.bf16.mxu0 0
    %634 = vmatpush1.bf16.msra.mxu0 0
    %635 = vmatprep.subr.bf16.mxu0 0
    %636 = vmatpush1.bf16.msra.mxu0 0
    %637 = vmatprep.subr.bf16.mxu0 0
    %638 = vmatpush1.bf16.msra.mxu0 0
    %639 = vmatprep.subr.bf16.mxu0 0
    %640 = vmatpush1.bf16.msra.mxu0 0
    %641 = vmatprep.subr.bf16.mxu0 0
    %642 = vmatpush1.bf16.msra.mxu0 0
    %643 = vmatprep.subr.bf16.mxu0 0
    %644 = vmatpush1.bf16.msra.mxu0 0
    %645 = vmatprep.mubr.bf16.mxu0 0
    %646 = vmatmul.mubr.bf16.gmra.mrb[0].mxu0 %v541
    %v647 = vpop.f32.mrb[0].mxu0
    %v648 = vadd.f32 %v563, %v647
    %v649 = vpop.f32.mrb[0].mxu0
    %v650 = vpop.f32.mrb[0].mxu0
    %v651 = vadd.f32 %v563, %v650
    %v652 = vpop.f32.mrb[0].mxu0
    %653 = vdwg.mxu0
    %v654 = vmax.f32 %v648, 0.0
    %v655 = vmax.f32 %v651, 0.0
    %v656 = vpack.c.bf16 %v655, %v654
    %v657 = vld [vmem:[#allocation11] sm:$0xff]
    %v658 = vld [vmem:[#allocation11 + $0x8] sm:$0xff]
    %v659 = vld [vmem:[#allocation11 + $0x10] sm:$0xff]
    %v660 = vld [vmem:[#allocation11 + $0x18] sm:$0xff]
    %v661 = vld [vmem:[#allocation11 + $0x20] sm:$0xff]
    %v662 = vld [vmem:[#allocation11 + $0x28] sm:$0xff]
    %v663 = vld [vmem:[#allocation11 + $0x30] sm:$0xff]
    %v664 = vld [vmem:[#allocation11 + $0x38] sm:$0xff]
    %v665 = vld [vmem:[#allocation11 + $0x40] sm:$0xff]
    %v666 = vld [vmem:[#allocation11 + $0x48] sm:$0xff]
    %v667 = vld [vmem:[#allocation11 + $0x50] sm:$0xff]
    %v668 = vld [vmem:[#allocation11 + $0x58] sm:$0xff]
    %v669 = vld [vmem:[#allocation11 + $0x60] sm:$0xff]
    %v670 = vld [vmem:[#allocation11 + $0x68] sm:$0xff]
    %v671 = vld [vmem:[#allocation11 + $0x70] sm:$0xff]
    %v672 = vld [vmem:[#allocation11 + $0x78] sm:$0xff]
    %v673 = vld [vmem:[%s10] sm:$0x3]
    %v675 = vlaneseq
    %v676 = vshrl.u32 %v675, 7
    %v677 = vsub.s32 0, %v676
    %v678 = vrot.slane %v673, %v677
    %v679 = vlaneseq
    %v680 = vshrl.u32 %v679, 7
    %v681 = vsub.s32 1, %v680
    %v682 = vrot.slane %v673, %v681
    %v701 = vunpack.c.l.b16 %v657
    %v702 = vunpack.c.h.b16 %v657
    %v703 = vunpack.c.l.b16 %v658
    %v704 = vunpack.c.h.b16 %v658
    %v705 = vunpack.c.l.b16 %v659
    %v706 = vunpack.c.h.b16 %v659
    %v707 = vunpack.c.l.b16 %v660
    %v708 = vunpack.c.h.b16 %v660
    %v709 = vunpack.c.l.b16 %v661
    %v710 = vunpack.c.h.b16 %v661
    %v711 = vunpack.c.l.b16 %v662
    %v712 = vunpack.c.h.b16 %v662
    %v713 = vunpack.c.l.b16 %v663
    %v714 = vunpack.c.h.b16 %v663
    %v715 = vunpack.c.l.b16 %v664
    %v716 = vunpack.c.h.b16 %v664
    %v717 = vunpack.c.l.b16 %v665
    %v718 = vunpack.c.h.b16 %v665
    %v719 = vunpack.c.l.b16 %v666
    %v720 = vunpack.c.h.b16 %v666
    %v721 = vunpack.c.l.b16 %v667
    %v722 = vunpack.c.h.b16 %v667
    %v723 = vunpack.c.l.b16 %v668
    %v724 = vunpack.c.h.b16 %v668
    %v725 = vunpack.c.l.b16 %v669
    %v726 = vunpack.c.h.b16 %v669
    %v727 = vunpack.c.l.b16 %v670
    %v728 = vunpack.c.h.b16 %v670
    %v729 = vunpack.c.l.b16 %v671
    %v730 = vunpack.c.h.b16 %v671
    %v731 = vunpack.c.l.b16 %v672
    %v732 = vunpack.c.h.b16 %v672
    %v733 = vpack.c.b16 %v703, %v701
    %v734 = vpack.c.b16 %v704, %v702
    %v735 = vpack.c.b16 %v707, %v705
    %v736 = vpack.c.b16 %v708, %v706
    %v737 = vpack.c.b16 %v711, %v709
    %v738 = vpack.c.b16 %v712, %v710
    %v739 = vpack.c.b16 %v715, %v713
    %v740 = vpack.c.b16 %v716, %v714
    %v741 = vpack.c.b16 %v719, %v717
    %v742 = vpack.c.b16 %v720, %v718
    %v743 = vpack.c.b16 %v723, %v721
    %v744 = vpack.c.b16 %v724, %v722
    %v745 = vpack.c.b16 %v727, %v725
    %v746 = vpack.c.b16 %v728, %v726
    %v747 = vpack.c.b16 %v731, %v729
    %v748 = vpack.c.b16 %v732, %v730
    %765 = vmatprep.subr.bf16.mxu0 %v734
    %766 = vmatpush1.bf16.msra.mxu0 %v733
    %767 = vmatprep.subr.bf16.mxu0 %v736
    %768 = vmatpush1.bf16.msra.mxu0 %v735
    %769 = vmatprep.subr.bf16.mxu0 %v738
    %770 = vmatpush1.bf16.msra.mxu0 %v737
    %771 = vmatprep.subr.bf16.mxu0 %v740
    %772 = vmatpush1.bf16.msra.mxu0 %v739
    %773 = vmatprep.subr.bf16.mxu0 %v742
    %774 = vmatpush1.bf16.msra.mxu0 %v741
    %775 = vmatprep.subr.bf16.mxu0 %v744
    %776 = vmatpush1.bf16.msra.mxu0 %v743
    %777 = vmatprep.subr.bf16.mxu0 %v746
    %778 = vmatpush1.bf16.msra.mxu0 %v745
    %779 = vmatprep.subr.bf16.mxu0 %v748
    %780 = vmatpush1.bf16.msra.mxu0 %v747
    %781 = vmatprep.subr.bf16.mxu0 0
    %782 = vmatpush1.bf16.msra.mxu0 0
    %783 = vmatprep.subr.bf16.mxu0 0
    %784 = vmatpush1.bf16.msra.mxu0 0
    %785 = vmatprep.subr.bf16.mxu0 0
    %786 = vmatpush1.bf16.msra.mxu0 0
    %787 = vmatprep.subr.bf16.mxu0 0
    %788 = vmatpush1.bf16.msra.mxu0 0
    %789 = vmatprep.subr.bf16.mxu0 0
    %790 = vmatpush1.bf16.msra.mxu0 0
    %791 = vmatprep.subr.bf16.mxu0 0
    %792 = vmatpush1.bf16.msra.mxu0 0
    %793 = vmatprep.subr.bf16.mxu0 0
    %794 = vmatpush1.bf16.msra.mxu0 0
    %795 = vmatprep.subr.bf16.mxu0 0
    %796 = vmatpush1.bf16.msra.mxu0 0
    %797 = vmatprep.mubr.bf16.mxu0 0
    %798 = vmatmul.mubr.bf16.gmra.mrb[0].mxu0 %v656
    %v799 = vpop.f32.mrb[0].mxu0
    %v800 = vadd.f32 %v678, %v799
    %v801 = vpop.f32.mrb[0].mxu0
    %v802 = vadd.f32 %v682, %v801
    %v803 = vpop.f32.mrb[0].mxu0
    %v804 = vadd.f32 %v678, %v803
    %v805 = vpop.f32.mrb[0].mxu0
    %v806 = vadd.f32 %v682, %v805
    %807 = vdwg.mxu0
    %808 = vst [vmem:[#allocation13] sm:$0xff] %v800
    %809 = vst [vmem:[#allocation13 + $0x8] sm:$0xff] %v802
    %810 = vst [vmem:[#allocation13 + $0x10] sm:$0xff] %v804
    %811 = vst [vmem:[#allocation13 + $0x18] sm:$0xff] %v806
    // Predicated region
    $region70: #{tpu_custom_call.1} parent=1 // pred_check
      _
    $region71: #{tpu_custom_call.1} parent=1 // pred_check_branch
      %813 = sbr.rel (0) target = $region73
    $region72: #{tpu_custom_call.1} parent=1 // pred_region
      %s815 = ssub.s32 512, 512
      %816 = vsyncadd [#allocation4], %s815
      %s817 = sshll.u32 [#allocation13], 4
      %s818 = int_to_ptr.vmem [resolvable:$true] %s817
      %823 = dma.vmem_to_hbm [thread:$0]  %s818, 512, %s11, [#allocation4], 256, 256, 16
    $region73: #{tpu_custom_call.1} parent=1 // pred_fallthru
      _
    // Predicated region
    $region74: #{tpu_custom_call.1} parent=1 // pred_check
      _
    $region75: #{tpu_custom_call.1} parent=1 // pred_check_branch
      %825 = sbr.rel (0) target = $region77
    $region76: #{tpu_custom_call.1} parent=1 // pred_region
      %s827 = ssub.s32 256, 256
      %828 = vsyncadd [#allocation15], %s827
      %s829 = sshll.u32 [#allocation14], 4
      %s830 = int_to_ptr.vmem [resolvable:$true] %s829
      %835 = dma.vmem_to_hbm [thread:$0]  %s830, 256, %s12, [#allocation15], 128, 128, 8
    $region77: #{tpu_custom_call.1} parent=1 // pred_fallthru
      _
    // Predicated region
    $region78: #{tpu_custom_call.1} parent=1 // pred_check
      _
    $region79: #{tpu_custom_call.1} parent=1 // pred_check_branch
      %837 = sbr.rel (0) target = $region81
    $region80: #{tpu_custom_call.1} parent=1 // pred_region
      %838 = dma.done [#allocation4], 512
    $region81: #{tpu_custom_call.1} parent=1 // pred_fallthru
      _
    // Predicated region
    $region82: #{tpu_custom_call.1} parent=1 // pred_check
      _
    $region83: #{tpu_custom_call.1} parent=1 // pred_check_branch
      %840 = sbr.rel (0) target = $region85
    $region84: #{tpu_custom_call.1} parent=1 // pred_region
      %841 = dma.done [#allocation15], 256
    $region85: #{tpu_custom_call.1} parent=1 // pred_fallthru
      _
    %842 = vsyncpa [#allocation3], 1
    %843 = vsyncpa [#allocation6], 1
    %844 = vsyncpa [#allocation9], 1
    %845 = vsyncpa [#allocation12], 1
    %846 = vsyncpa [#allocation4], 1
    %847 = vsyncpa [#allocation15], 1

</llo_original>
